<compile_context>
chip_gen: v7x
topology: tpu7x:2x2x1
jax: 0.10.0
libtpu: 0.0.40
codegen_flags: <defaults>
</compile_context>

<pallas_src>
import functools
import math

import jax
import jax.numpy as jnp
from jax.experimental import pallas as pl
from jax.experimental.pallas import tpu as pltpu


# ----------------------------------------------------------------------------
# Helpers
# ----------------------------------------------------------------------------
def _layer_norm(x, gamma, beta, eps=1e-5):
    # f32 statistics (matches nn.LayerNorm defaults, eps=1e-5)
    mean = jnp.mean(x, axis=-1, keepdims=True)
    c = x - mean
    var = jnp.mean(c * c, axis=-1, keepdims=True)
    return c * jax.lax.rsqrt(var + eps) * gamma + beta


def _vmem_limit_bytes():
    """Generation-aware VMEM budget: ~3/4 of physical, capped at 100 MiB."""
    try:
        cap = int(pltpu.get_tpu_info().vmem_capacity_bytes)
    except Exception:
        cap = 64 * 1024 * 1024          # conservative fallback (v7x-sized)
    return max(32 * 1024 * 1024, min((cap * 3) // 4, 100 * 1024 * 1024))


def _pick_tile(n, pref):
    for t in (pref, 128, 64, 32, 16, 8):
        if t <= n and n % t == 0:
            return t
    return n


# ----------------------------------------------------------------------------
# Encoder stack kernel: grid = (batch, layer), output block is the layer carry
# ----------------------------------------------------------------------------
def encoder_stack_kernel(x_ref, wqkv_ref, bqkv_ref, wo_ref, bo_ref,
                         ln1g_ref, ln1b_ref, w1_ref, b1_ref, w2_ref, b2_ref,
                         ln2g_ref, ln2b_ref, o_ref, *, num_heads):
    f32, bf16 = jnp.float32, jnp.bfloat16
    l = pl.program_id(1)

    # Layer 0: seed the resident carry block with the embedded input.
    @pl.when(l == 0)
    def _():
        o_ref[...] = x_ref[...]

    x = o_ref[...]                       # (S, E) f32, carried across the layer axis
    S, E = x.shape
    H = num_heads
    d = E // H
    scale = 1.0 / math.sqrt(d)

    # ---- fused QKV projection: one flat (S,E)@(E,3E) MXU matmul --------------
    x_bf = x.astype(bf16)
    qkv = jnp.dot(x_bf, wqkv_ref[...], preferred_element_type=f32) + bqkv_ref[...]

    # ---- per-head scaled dot-product attention (S x S fits VMEM at toy S) ----
    # TODO(synk): flash-style KV tiling + online softmax at production S.
    ctx_heads = []
    for h in range(H):                   # static loop, H is small
        qh = qkv[:, h * d:(h + 1) * d].astype(bf16)
        kh = qkv[:, E + h * d:E + (h + 1) * d].astype(bf16)
        vh = qkv[:, 2 * E + h * d:2 * E + (h + 1) * d].astype(bf16)
        s = jnp.einsum('qd,kd->qk', qh, kh, preferred_element_type=f32) * scale
        s = s - jnp.max(s, axis=-1, keepdims=True)
        p = jnp.exp(s)
        p = p * pl.reciprocal(jnp.sum(p, axis=-1, keepdims=True), approx=True)
        ctx_heads.append(jnp.dot(p.astype(bf16), vh, preferred_element_type=f32))
    # Head-merge (== PyTorch concat over heads); single (E,E) output projection.
    ctx = jnp.concatenate(ctx_heads, axis=-1)                       # (S, E) f32
    attn = jnp.dot(ctx.astype(bf16), wo_ref[...],
                   preferred_element_type=f32) + bo_ref[...]

    x1 = _layer_norm(x + attn, ln1g_ref[...], ln1b_ref[...])

    # ---- feed-forward (ReLU); dropout is a no-op at inference ---------------
    h1 = jnp.dot(x1.astype(bf16), w1_ref[...], preferred_element_type=f32) + b1_ref[...]
    h1 = jnp.maximum(h1, 0.0)
    ff = jnp.dot(h1.astype(bf16), w2_ref[...], preferred_element_type=f32) + b2_ref[...]

    o_ref[...] = _layer_norm(x1 + ff, ln2g_ref[...], ln2b_ref[...])


def run_encoder_stack(x, kp, num_heads):
    B, S, E = x.shape
    L = kp["wqkv"].shape[0]

    weight_names = ["wqkv", "bqkv", "wo", "bo", "ln1_g", "ln1_b",
                    "w1", "b1", "w2", "b2", "ln2_g", "ln2_b"]

    def per_layer(arr):
        # Weights stacked on a leading layer dim; stream one layer per grid step.
        nd = arr.ndim
        return pl.BlockSpec((None,) + arr.shape[1:],
                            lambda b, l, _nd=nd: (l,) + (0,) * (_nd - 1))

    in_specs = [pl.BlockSpec((None, S, E), lambda b, l: (b, 0, 0))]
    in_specs += [per_layer(kp[n]) for n in weight_names]

    return pl.pallas_call(
        functools.partial(encoder_stack_kernel, num_heads=num_heads),
        out_shape=jax.ShapeDtypeStruct((B, S, E), jnp.float32),
        grid=(B, L),
        in_specs=in_specs,
        out_specs=pl.BlockSpec((None, S, E), lambda b, l: (b, 0, 0)),
        compiler_params=pltpu.CompilerParams(
            dimension_semantics=("parallel", "arbitrary"),
            vmem_limit_bytes=_vmem_limit_bytes()),
    )(x, *[kp[n] for n in weight_names])


# ----------------------------------------------------------------------------
# Final vocab projection kernel: tiled over (B*S, Vp), lane-dense output
# ----------------------------------------------------------------------------
def vocab_head_kernel(x_ref, w_ref, b_ref, o_ref):
    o_ref[...] = (jnp.dot(x_ref[...].astype(jnp.bfloat16), w_ref[...],
                          preferred_element_type=jnp.float32) + b_ref[...])


def run_vocab_head(x2d, fc_w, fc_b):
    M, E = x2d.shape
    Vp = fc_w.shape[1]
    tv = 256 if Vp % 256 == 0 else 128      # 256-wide on v6e/v7x MXU; Vp is 128-padded
    tm = _pick_tile(M, 128)
    return pl.pallas_call(
        vocab_head_kernel,
        out_shape=jax.ShapeDtypeStruct((M, Vp), jnp.float32),
        grid=(M // tm, Vp // tv),
        in_specs=[pl.BlockSpec((tm, E), lambda i, j: (i, 0)),
                  pl.BlockSpec((E, tv), lambda i, j: (0, j)),
                  pl.BlockSpec((1, tv), lambda i, j: (0, j))],
        out_specs=pl.BlockSpec((tm, tv), lambda i, j: (i, j)),
        compiler_params=pltpu.CompilerParams(
            dimension_semantics=("parallel", "parallel"),
            vmem_limit_bytes=_vmem_limit_bytes()),
    )(x2d, fc_w, fc_b)


# ----------------------------------------------------------------------------
# Parameters: logical (PyTorch-like, f32) init + packing into kernel layout
# ----------------------------------------------------------------------------
def init_params(key, vocab_size, embed_size, num_layers, hidden_size):
    E, F, V = embed_size, hidden_size, vocab_size
    keys = iter(jax.random.split(key, 2 + num_layers * 6))
    s = 0.02

    def rnd(shape):
        return (s * jax.random.normal(next(keys), shape)).astype(jnp.float32)

    params = {
        "embedding": rnd((V, E)),
        "fc_w": rnd((E, V)),
        "fc_b": jnp.zeros((V,), jnp.float32),
        "layers": [],
    }
    for _ in range(num_layers):
        params["layers"].append({
            "wq": rnd((E, E)), "wk": rnd((E, E)), "wv": rnd((E, E)),
            "bq": jnp.zeros((E,), jnp.float32),
            "bk": jnp.zeros((E,), jnp.float32),
            "bv": jnp.zeros((E,), jnp.float32),
            "wo": rnd((E, E)), "bo": jnp.zeros((E,), jnp.float32),
            "ln1_g": jnp.ones((E,), jnp.float32),
            "ln1_b": jnp.zeros((E,), jnp.float32),
            "w1": rnd((E, F)), "b1": jnp.zeros((F,), jnp.float32),
            "w2": rnd((F, E)), "b2": jnp.zeros((E,), jnp.float32),
            "ln2_g": jnp.ones((E,), jnp.float32),
            "ln2_b": jnp.zeros((E,), jnp.float32),
        })
    return params


def pack_kernel_params(params, lane_multiple=128):
    """Layers stacked on a leading dim; fused lane-dense QKV weight; bf16 matmul
    weights with f32 biases/LN params; vocab head padded to a 128-lane multiple."""
    E = params["embedding"].shape[1]
    layers = params["layers"]
    bf16 = jnp.bfloat16

    def stack(fn, dtype=None):
        a = jnp.stack([fn(lp) for lp in layers], axis=0)
        return a.astype(dtype) if dtype is not None else a

    kp = {
        "wqkv": stack(lambda p: jnp.concatenate(
            [p["wq"], p["wk"], p["wv"]], axis=1), bf16),           # (L, E, 3E)
        "bqkv": stack(lambda p: jnp.concatenate(
            [p["bq"], p["bk"], p["bv"]]).reshape(1, 3 * E)),       # (L, 1, 3E) f32
        "wo": stack(lambda p: p["wo"], bf16),                      # (L, E, E)
        "bo": stack(lambda p: p["bo"].reshape(1, E)),
        "ln1_g": stack(lambda p: p["ln1_g"].reshape(1, E)),
        "ln1_b": stack(lambda p: p["ln1_b"].reshape(1, E)),
        "w1": stack(lambda p: p["w1"], bf16),                      # (L, E, F)
        "b1": stack(lambda p: p["b1"].reshape(1, -1)),
        "w2": stack(lambda p: p["w2"], bf16),                      # (L, F, E)
        "b2": stack(lambda p: p["b2"].reshape(1, E)),
        "ln2_g": stack(lambda p: p["ln2_g"].reshape(1, E)),
        "ln2_b": stack(lambda p: p["ln2_b"].reshape(1, E)),
    }
    V = params["fc_w"].shape[1]
    Vp = ((V + lane_multiple - 1) // lane_multiple) * lane_multiple
    fc_w = jnp.zeros((E, Vp), jnp.float32).at[:, :V].set(params["fc_w"])
    fc_b = jnp.zeros((1, Vp), jnp.float32).at[0, :V].set(params["fc_b"])
    kp["fc_w"] = fc_w.astype(bf16)                                 # (E, Vp)
    kp["fc_b"] = fc_b                                              # (1, Vp) f32
    return kp


# ----------------------------------------------------------------------------
# Model forward (embedding/PE glue in plain JAX, hot path in Pallas)
# ----------------------------------------------------------------------------
def make_positional_encoding(embed_size, max_seq_length):
    pe = jnp.zeros((max_seq_length, embed_size), dtype=jnp.float32)
    position = jnp.arange(0, max_seq_length, dtype=jnp.float32)[:, None]
    div_term = jnp.exp(jnp.arange(0, embed_size, 2, dtype=jnp.float32)
                       * (-math.log(10000.0) / embed_size))
    pe = pe.at[:, 0::2].set(jnp.sin(position * div_term))
    if embed_size % 2 == 0:
        pe = pe.at[:, 1::2].set(jnp.cos(position * div_term))
    else:
        pe = pe.at[:, 1::2].set(jnp.cos(position * div_term[:-1]))
    return pe


def transformer_forward(embedding, kp, src, pe, embed_size, vocab_size, num_heads):
    B, S = src.shape
    # Embedding lookup + sqrt(E) scale + positional encoding: plain-JAX glue.
    x = embedding[src] * math.sqrt(embed_size) + pe[None, :S, :]   # (B, S, E)
    enc = run_encoder_stack(x, kp, num_heads)                      # (B, S, E)
    logits_p = run_vocab_head(enc.reshape(B * S, embed_size),
                              kp["fc_w"], kp["fc_b"])              # (B*S, Vp)
    return logits_p.reshape(B, S, -1)[..., :vocab_size]


# ----------------------------------------------------------------------------
# Pure-JAX f32 reference (tolerance check vs the bf16-MXU kernel)
# ----------------------------------------------------------------------------
def reference_forward(params, src, pe, embed_size, num_heads):
    x = params["embedding"][src] * math.sqrt(embed_size)
    S = src.shape[1]
    x = x + pe[None, :S, :]
    B, _, E = x.shape
    H, d = num_heads, E // num_heads
    for lp in params["layers"]:
        q = (x @ lp["wq"] + lp["bq"]).reshape(B, S, H, d).transpose(0, 2, 1, 3)
        k = (x @ lp["wk"] + lp["bk"]).reshape(B, S, H, d).transpose(0, 2, 1, 3)
        v = (x @ lp["wv"] + lp["bv"]).reshape(B, S, H, d).transpose(0, 2, 1, 3)
        s = jnp.einsum('bhqd,bhkd->bhqk', q, k) / math.sqrt(d)
        p = jax.nn.softmax(s, axis=-1)
        o = jnp.einsum('bhqk,bhkd->bhqd', p, v).transpose(0, 2, 1, 3).reshape(B, S, E)
        attn = o @ lp["wo"] + lp["bo"]
        x1 = _layer_norm(x + attn, lp["ln1_g"], lp["ln1_b"])
        ff = jnp.maximum(x1 @ lp["w1"] + lp["b1"], 0.0) @ lp["w2"] + lp["b2"]
        x = _layer_norm(x1 + ff, lp["ln2_g"], lp["ln2_b"])
    return x @ params["fc_w"] + params["fc_b"]


# ----------------------------------------------------------------------------
if __name__ == "__main__":
    vocab_size = 32
    embed_size = 32
    num_heads = 4
    num_layers = 2
    hidden_size = 64
    max_seq_length = 64
    B, S = 2, 8

    key = jax.random.PRNGKey(0)
    k_params, k_tokens = jax.random.split(key)

    params = init_params(k_params, vocab_size, embed_size, num_layers, hidden_size)
    kernel_params = pack_kernel_params(params)
    pe = make_positional_encoding(embed_size, max_seq_length)

    src = jax.random.randint(k_tokens, (B, S), 0, vocab_size, dtype=jnp.int32)

    fwd = jax.jit(lambda emb, kpp, tok: transformer_forward(
        emb, kpp, tok, pe, embed_size, vocab_size, num_heads))
    logits = jax.block_until_ready(fwd(params["embedding"], kernel_params, src))

    assert logits.shape == (B, S, vocab_size)
    assert logits.dtype == jnp.float32
    assert bool(jnp.all(jnp.isfinite(logits)))

    # Numerical parity with the f32 reference (bf16 MXU + approx reciprocal).
    ref = reference_forward(params, src, pe, embed_size, num_heads)
    max_err = float(jnp.max(jnp.abs(logits - ref)))
    assert bool(jnp.allclose(logits, ref, atol=5e-2, rtol=5e-2)), max_err

    print("KERNEL_OK")
</pallas_src>

<mosaic_0001>
module attributes {stable_mosaic.version = 11 : i64} {
  func.func @encoder_stack_kernel(%arg0: i32, %arg1: i32, %arg2: memref<1x8x32xf32, #tpu.memory_space<vmem>>, %arg3: memref<1x32x96xbf16, #tpu.memory_space<vmem>>, %arg4: memref<1x1x96xf32, #tpu.memory_space<vmem>>, %arg5: memref<1x32x32xbf16, #tpu.memory_space<vmem>>, %arg6: memref<1x1x32xf32, #tpu.memory_space<vmem>>, %arg7: memref<1x1x32xf32, #tpu.memory_space<vmem>>, %arg8: memref<1x1x32xf32, #tpu.memory_space<vmem>>, %arg9: memref<1x32x64xbf16, #tpu.memory_space<vmem>>, %arg10: memref<1x1x64xf32, #tpu.memory_space<vmem>>, %arg11: memref<1x64x32xbf16, #tpu.memory_space<vmem>>, %arg12: memref<1x1x32xf32, #tpu.memory_space<vmem>>, %arg13: memref<1x1x32xf32, #tpu.memory_space<vmem>>, %arg14: memref<1x1x32xf32, #tpu.memory_space<vmem>>, %arg15: memref<1x8x32xf32, #tpu.memory_space<vmem>>) attributes {dimension_semantics = [#tpu.dimension_semantics<parallel>, #tpu.dimension_semantics<arbitrary>], iteration_bounds = array<i64: 2, 2>, scalar_prefetch = 0 : i64, scratch_operands = 0 : i64, tpu.core_type = #tpu.core_type<tc>, window_params = [{transform_indices = @transform_0, window_bounds = array<i64: 1, 8, 32>}, {transform_indices = @transform_1, window_bounds = array<i64: 1, 32, 96>}, {transform_indices = @transform_2, window_bounds = array<i64: 1, 1, 96>}, {transform_indices = @transform_3, window_bounds = array<i64: 1, 32, 32>}, {transform_indices = @transform_4, window_bounds = array<i64: 1, 1, 32>}, {transform_indices = @transform_5, window_bounds = array<i64: 1, 1, 32>}, {transform_indices = @transform_6, window_bounds = array<i64: 1, 1, 32>}, {transform_indices = @transform_7, window_bounds = array<i64: 1, 32, 64>}, {transform_indices = @transform_8, window_bounds = array<i64: 1, 1, 64>}, {transform_indices = @transform_9, window_bounds = array<i64: 1, 64, 32>}, {transform_indices = @transform_10, window_bounds = array<i64: 1, 1, 32>}, {transform_indices = @transform_11, window_bounds = array<i64: 1, 1, 32>}, {transform_indices = @transform_12, window_bounds = array<i64: 1, 1, 32>}, {transform_indices = @transform_13, window_bounds = array<i64: 1, 8, 32>}]} {
    %c0_i32 = arith.constant 0 : i32
    %0 = arith.cmpi eq, %arg1, %c0_i32 : i32
    %1 = arith.extui %0 : i1 to i32
    %c0_i32_0 = arith.constant 0 : i32
    %2 = arith.cmpi ne, %1, %c0_i32_0 : i32
    scf.if %2 {
      %c0_76 = arith.constant 0 : index
      %c0_77 = arith.constant 0 : index
      %c0_78 = arith.constant 0 : index
      %177 = vector.load %arg2[%c0_76, %c0_77, %c0_78] : memref<1x8x32xf32, #tpu.memory_space<vmem>>, vector<1x8x32xf32>
      %178 = vector.shape_cast %177 : vector<1x8x32xf32> to vector<8x32xf32>
      %c0_79 = arith.constant 0 : index
      %c0_80 = arith.constant 0 : index
      %c0_81 = arith.constant 0 : index
      %179 = vector.load %arg15[%c0_79, %c0_80, %c0_81] : memref<1x8x32xf32, #tpu.memory_space<vmem>>, vector<1x8x32xf32>
      %180 = vector.shape_cast %179 : vector<1x8x32xf32> to vector<8x32xf32>
      %181 = vector.shape_cast %178 : vector<8x32xf32> to vector<1x8x32xf32>
      tpu.vector_store %arg15[%c0_79, %c0_80, %c0_81], %181 {strides = array<i32>} : memref<1x8x32xf32, #tpu.memory_space<vmem>>, vector<1x8x32xf32>,
    } else {
    }
    %c0 = arith.constant 0 : index
    %c0_1 = arith.constant 0 : index
    %c0_2 = arith.constant 0 : index
    %3 = vector.load %arg15[%c0, %c0_1, %c0_2] : memref<1x8x32xf32, #tpu.memory_space<vmem>>, vector<1x8x32xf32>
    %4 = vector.shape_cast %3 : vector<1x8x32xf32> to vector<8x32xf32>
    %5 = arith.truncf %4 : vector<8x32xf32> to vector<8x32xbf16>
    %c0_3 = arith.constant 0 : index
    %c0_4 = arith.constant 0 : index
    %c0_5 = arith.constant 0 : index
    %6 = vector.load %arg3[%c0_3, %c0_4, %c0_5] : memref<1x32x96xbf16, #tpu.memory_space<vmem>>, vector<1x32x96xbf16>
    %7 = vector.shape_cast %6 : vector<1x32x96xbf16> to vector<32x96xbf16>
    %cst = arith.constant dense<0.000000e+00> : vector<8x96xf32>
    %8 = tpu.matmul %5, %7, %cst {dimension_numbers = #tpu.dot_dimension_numbers<[1], [0], [0], [1], [0, 0, 1, 1], [], []>} : vector<8x32xbf16>, vector<32x96xbf16>, vector<8x96xf32> -> vector<8x96xf32>
    %c0_6 = arith.constant 0 : index
    %c0_7 = arith.constant 0 : index
    %c0_8 = arith.constant 0 : index
    %9 = vector.load %arg4[%c0_6, %c0_7, %c0_8] : memref<1x1x96xf32, #tpu.memory_space<vmem>>, vector<1x1x96xf32>
    %10 = vector.shape_cast %9 : vector<1x1x96xf32> to vector<1x96xf32>
    %11 = vector.broadcast %10 : vector<1x96xf32> to vector<8x96xf32>
    %12 = arith.addf %8, %11 : vector<8x96xf32>
    %13 = vector.extract_strided_slice %12 {offsets = [0, 0], sizes = [8, 8], strides = [1, 1]} : vector<8x96xf32> to vector<8x8xf32>
    %14 = arith.truncf %13 : vector<8x8xf32> to vector<8x8xbf16>
    %15 = vector.extract_strided_slice %12 {offsets = [0, 32], sizes = [8, 8], strides = [1, 1]} : vector<8x96xf32> to vector<8x8xf32>
    %16 = arith.truncf %15 : vector<8x8xf32> to vector<8x8xbf16>
    %17 = vector.extract_strided_slice %12 {offsets = [0, 64], sizes = [8, 8], strides = [1, 1]} : vector<8x96xf32> to vector<8x8xf32>
    %18 = arith.truncf %17 : vector<8x8xf32> to vector<8x8xbf16>
    "tpu.trace_start"() <{level = 10 : i32, message = "qd,kd->qk"}> : () -> ()
    %cst_9 = arith.constant dense<0.000000e+00> : vector<8x8xf32>
    %19 = tpu.matmul %14, %16, %cst_9 {dimension_numbers = #tpu.dot_dimension_numbers<[1], [1], [0], [0], [0, 0, 1, 0], [], []>} : vector<8x8xbf16>, vector<8x8xbf16>, vector<8x8xf32> -> vector<8x8xf32>
    "tpu.trace_stop"() : () -> ()
    %cst_10 = arith.constant 0.353553385 : f32
    %20 = vector.broadcast %cst_10 : f32 to vector<8x8xf32>
    %21 = arith.mulf %19, %20 : vector<8x8xf32>
    %cst_11 = arith.constant dense<0xFF800000> : vector<8xf32>
    %22 = vector.multi_reduction <maximumf>, %21, %cst_11 [1] : vector<8x8xf32> to vector<8xf32>
    %23 = vector.shape_cast %22 : vector<8xf32> to vector<8x1xf32>
    %24 = vector.broadcast %23 : vector<8x1xf32> to vector<8x8xf32>
    %25 = arith.subf %21, %24 : vector<8x8xf32>
    %26 = math.exp %25 : vector<8x8xf32>
    %cst_12 = arith.constant dense<0.000000e+00> : vector<8xf32>
    %27 = vector.multi_reduction <add>, %26, %cst_12 [1] : vector<8x8xf32> to vector<8xf32>
    %28 = vector.shape_cast %27 : vector<8xf32> to vector<8x1xf32>
    %29 = tpu.reciprocal %28 {approx = true} : vector<8x1xf32> -> vector<8x1xf32>
    %30 = vector.broadcast %29 : vector<8x1xf32> to vector<8x8xf32>
    %31 = arith.mulf %26, %30 : vector<8x8xf32>
    %32 = arith.truncf %31 : vector<8x8xf32> to vector<8x8xbf16>
    %cst_13 = arith.constant dense<0.000000e+00> : vector<8x8xf32>
    %33 = tpu.matmul %32, %18, %cst_13 {dimension_numbers = #tpu.dot_dimension_numbers<[1], [0], [0], [1], [0, 0, 1, 1], [], []>} : vector<8x8xbf16>, vector<8x8xbf16>, vector<8x8xf32> -> vector<8x8xf32>
    %34 = vector.extract_strided_slice %12 {offsets = [0, 8], sizes = [8, 8], strides = [1, 1]} : vector<8x96xf32> to vector<8x8xf32>
    %35 = arith.truncf %34 : vector<8x8xf32> to vector<8x8xbf16>
    %36 = vector.extract_strided_slice %12 {offsets = [0, 40], sizes = [8, 8], strides = [1, 1]} : vector<8x96xf32> to vector<8x8xf32>
    %37 = arith.truncf %36 : vector<8x8xf32> to vector<8x8xbf16>
    %38 = vector.extract_strided_slice %12 {offsets = [0, 72], sizes = [8, 8], strides = [1, 1]} : vector<8x96xf32> to vector<8x8xf32>
    %39 = arith.truncf %38 : vector<8x8xf32> to vector<8x8xbf16>
    "tpu.trace_start"() <{level = 10 : i32, message = "qd,kd->qk"}> : () -> ()
    %cst_14 = arith.constant dense<0.000000e+00> : vector<8x8xf32>
    %40 = tpu.matmul %35, %37, %cst_14 {dimension_numbers = #tpu.dot_dimension_numbers<[1], [1], [0], [0], [0, 0, 1, 0], [], []>} : vector<8x8xbf16>, vector<8x8xbf16>, vector<8x8xf32> -> vector<8x8xf32>
    "tpu.trace_stop"() : () -> ()
    %cst_15 = arith.constant 0.353553385 : f32
    %41 = vector.broadcast %cst_15 : f32 to vector<8x8xf32>
    %42 = arith.mulf %40, %41 : vector<8x8xf32>
    %cst_16 = arith.constant dense<0xFF800000> : vector<8xf32>
    %43 = vector.multi_reduction <maximumf>, %42, %cst_16 [1] : vector<8x8xf32> to vector<8xf32>
    %44 = vector.shape_cast %43 : vector<8xf32> to vector<8x1xf32>
    %45 = vector.broadcast %44 : vector<8x1xf32> to vector<8x8xf32>
    %46 = arith.subf %42, %45 : vector<8x8xf32>
    %47 = math.exp %46 : vector<8x8xf32>
    %cst_17 = arith.constant dense<0.000000e+00> : vector<8xf32>
    %48 = vector.multi_reduction <add>, %47, %cst_17 [1] : vector<8x8xf32> to vector<8xf32>
    %49 = vector.shape_cast %48 : vector<8xf32> to vector<8x1xf32>
    %50 = tpu.reciprocal %49 {approx = true} : vector<8x1xf32> -> vector<8x1xf32>
    %51 = vector.broadcast %50 : vector<8x1xf32> to vector<8x8xf32>
    %52 = arith.mulf %47, %51 : vector<8x8xf32>
    %53 = arith.truncf %52 : vector<8x8xf32> to vector<8x8xbf16>
    %cst_18 = arith.constant dense<0.000000e+00> : vector<8x8xf32>
    %54 = tpu.matmul %53, %39, %cst_18 {dimension_numbers = #tpu.dot_dimension_numbers<[1], [0], [0], [1], [0, 0, 1, 1], [], []>} : vector<8x8xbf16>, vector<8x8xbf16>, vector<8x8xf32> -> vector<8x8xf32>
    %55 = vector.extract_strided_slice %12 {offsets = [0, 16], sizes = [8, 8], strides = [1, 1]} : vector<8x96xf32> to vector<8x8xf32>
    %56 = arith.truncf %55 : vector<8x8xf32> to vector<8x8xbf16>
    %57 = vector.extract_strided_slice %12 {offsets = [0, 48], sizes = [8, 8], strides = [1, 1]} : vector<8x96xf32> to vector<8x8xf32>
    %58 = arith.truncf %57 : vector<8x8xf32> to vector<8x8xbf16>
    %59 = vector.extract_strided_slice %12 {offsets = [0, 80], sizes = [8, 8], strides = [1, 1]} : vector<8x96xf32> to vector<8x8xf32>
    %60 = arith.truncf %59 : vector<8x8xf32> to vector<8x8xbf16>
    "tpu.trace_start"() <{level = 10 : i32, message = "qd,kd->qk"}> : () -> ()
    %cst_19 = arith.constant dense<0.000000e+00> : vector<8x8xf32>
    %61 = tpu.matmul %56, %58, %cst_19 {dimension_numbers = #tpu.dot_dimension_numbers<[1], [1], [0], [0], [0, 0, 1, 0], [], []>} : vector<8x8xbf16>, vector<8x8xbf16>, vector<8x8xf32> -> vector<8x8xf32>
    "tpu.trace_stop"() : () -> ()
    %cst_20 = arith.constant 0.353553385 : f32
    %62 = vector.broadcast %cst_20 : f32 to vector<8x8xf32>
    %63 = arith.mulf %61, %62 : vector<8x8xf32>
    %cst_21 = arith.constant dense<0xFF800000> : vector<8xf32>
    %64 = vector.multi_reduction <maximumf>, %63, %cst_21 [1] : vector<8x8xf32> to vector<8xf32>
    %65 = vector.shape_cast %64 : vector<8xf32> to vector<8x1xf32>
    %66 = vector.broadcast %65 : vector<8x1xf32> to vector<8x8xf32>
    %67 = arith.subf %63, %66 : vector<8x8xf32>
    %68 = math.exp %67 : vector<8x8xf32>
    %cst_22 = arith.constant dense<0.000000e+00> : vector<8xf32>
    %69 = vector.multi_reduction <add>, %68, %cst_22 [1] : vector<8x8xf32> to vector<8xf32>
    %70 = vector.shape_cast %69 : vector<8xf32> to vector<8x1xf32>
    %71 = tpu.reciprocal %70 {approx = true} : vector<8x1xf32> -> vector<8x1xf32>
    %72 = vector.broadcast %71 : vector<8x1xf32> to vector<8x8xf32>
    %73 = arith.mulf %68, %72 : vector<8x8xf32>
    %74 = arith.truncf %73 : vector<8x8xf32> to vector<8x8xbf16>
    %cst_23 = arith.constant dense<0.000000e+00> : vector<8x8xf32>
    %75 = tpu.matmul %74, %60, %cst_23 {dimension_numbers = #tpu.dot_dimension_numbers<[1], [0], [0], [1], [0, 0, 1, 1], [], []>} : vector<8x8xbf16>, vector<8x8xbf16>, vector<8x8xf32> -> vector<8x8xf32>
    %76 = vector.extract_strided_slice %12 {offsets = [0, 24], sizes = [8, 8], strides = [1, 1]} : vector<8x96xf32> to vector<8x8xf32>
    %77 = arith.truncf %76 : vector<8x8xf32> to vector<8x8xbf16>
    %78 = vector.extract_strided_slice %12 {offsets = [0, 56], sizes = [8, 8], strides = [1, 1]} : vector<8x96xf32> to vector<8x8xf32>
    %79 = arith.truncf %78 : vector<8x8xf32> to vector<8x8xbf16>
    %80 = vector.extract_strided_slice %12 {offsets = [0, 88], sizes = [8, 8], strides = [1, 1]} : vector<8x96xf32> to vector<8x8xf32>
    %81 = arith.truncf %80 : vector<8x8xf32> to vector<8x8xbf16>
    "tpu.trace_start"() <{level = 10 : i32, message = "qd,kd->qk"}> : () -> ()
    %cst_24 = arith.constant dense<0.000000e+00> : vector<8x8xf32>
    %82 = tpu.matmul %77, %79, %cst_24 {dimension_numbers = #tpu.dot_dimension_numbers<[1], [1], [0], [0], [0, 0, 1, 0], [], []>} : vector<8x8xbf16>, vector<8x8xbf16>, vector<8x8xf32> -> vector<8x8xf32>
    "tpu.trace_stop"() : () -> ()
    %cst_25 = arith.constant 0.353553385 : f32
    %83 = vector.broadcast %cst_25 : f32 to vector<8x8xf32>
    %84 = arith.mulf %82, %83 : vector<8x8xf32>
    %cst_26 = arith.constant dense<0xFF800000> : vector<8xf32>
    %85 = vector.multi_reduction <maximumf>, %84, %cst_26 [1] : vector<8x8xf32> to vector<8xf32>
    %86 = vector.shape_cast %85 : vector<8xf32> to vector<8x1xf32>
    %87 = vector.broadcast %86 : vector<8x1xf32> to vector<8x8xf32>
    %88 = arith.subf %84, %87 : vector<8x8xf32>
    %89 = math.exp %88 : vector<8x8xf32>
    %cst_27 = arith.constant dense<0.000000e+00> : vector<8xf32>
    %90 = vector.multi_reduction <add>, %89, %cst_27 [1] : vector<8x8xf32> to vector<8xf32>
    %91 = vector.shape_cast %90 : vector<8xf32> to vector<8x1xf32>
    %92 = tpu.reciprocal %91 {approx = true} : vector<8x1xf32> -> vector<8x1xf32>
    %93 = vector.broadcast %92 : vector<8x1xf32> to vector<8x8xf32>
    %94 = arith.mulf %89, %93 : vector<8x8xf32>
    %95 = arith.truncf %94 : vector<8x8xf32> to vector<8x8xbf16>
    %cst_28 = arith.constant dense<0.000000e+00> : vector<8x8xf32>
    %96 = tpu.matmul %95, %81, %cst_28 {dimension_numbers = #tpu.dot_dimension_numbers<[1], [0], [0], [1], [0, 0, 1, 1], [], []>} : vector<8x8xbf16>, vector<8x8xbf16>, vector<8x8xf32> -> vector<8x8xf32>
    %97 = tpu.concatenate %33, %54, %75, %96 in 1 : vector<8x8xf32>, vector<8x8xf32>, vector<8x8xf32>, vector<8x8xf32> -> vector<8x32xf32>
    %98 = arith.truncf %97 : vector<8x32xf32> to vector<8x32xbf16>
    %c0_29 = arith.constant 0 : index
    %c0_30 = arith.constant 0 : index
    %c0_31 = arith.constant 0 : index
    %99 = vector.load %arg5[%c0_29, %c0_30, %c0_31] : memref<1x32x32xbf16, #tpu.memory_space<vmem>>, vector<1x32x32xbf16>
    %100 = vector.shape_cast %99 : vector<1x32x32xbf16> to vector<32x32xbf16>
    %cst_32 = arith.constant dense<0.000000e+00> : vector<8x32xf32>
    %101 = tpu.matmul %98, %100, %cst_32 {dimension_numbers = #tpu.dot_dimension_numbers<[1], [0], [0], [1], [0, 0, 1, 1], [], []>} : vector<8x32xbf16>, vector<32x32xbf16>, vector<8x32xf32> -> vector<8x32xf32>
    %c0_33 = arith.constant 0 : index
    %c0_34 = arith.constant 0 : index
    %c0_35 = arith.constant 0 : index
    %102 = vector.load %arg6[%c0_33, %c0_34, %c0_35] : memref<1x1x32xf32, #tpu.memory_space<vmem>>, vector<1x1x32xf32>
    %103 = vector.shape_cast %102 : vector<1x1x32xf32> to vector<1x32xf32>
    %104 = vector.broadcast %103 : vector<1x32xf32> to vector<8x32xf32>
    %105 = arith.addf %101, %104 : vector<8x32xf32>
    %106 = arith.addf %4, %105 : vector<8x32xf32>
    %c0_36 = arith.constant 0 : index
    %c0_37 = arith.constant 0 : index
    %c0_38 = arith.constant 0 : index
    %107 = vector.load %arg7[%c0_36, %c0_37, %c0_38] : memref<1x1x32xf32, #tpu.memory_space<vmem>>, vector<1x1x32xf32>
    %108 = vector.shape_cast %107 : vector<1x1x32xf32> to vector<1x32xf32>
    %c0_39 = arith.constant 0 : index
    %c0_40 = arith.constant 0 : index
    %c0_41 = arith.constant 0 : index
    %109 = vector.load %arg8[%c0_39, %c0_40, %c0_41] : memref<1x1x32xf32, #tpu.memory_space<vmem>>, vector<1x1x32xf32>
    %110 = vector.shape_cast %109 : vector<1x1x32xf32> to vector<1x32xf32>
    %cst_42 = arith.constant dense<0.000000e+00> : vector<8xf32>
    %111 = vector.multi_reduction <add>, %106, %cst_42 [1] : vector<8x32xf32> to vector<8xf32>
    %112 = vector.shape_cast %111 : vector<8xf32> to vector<8x1xf32>
    %cst_43 = arith.constant 3.200000e+01 : f32
    %113 = vector.broadcast %cst_43 : f32 to vector<8x1xf32>
    %114 = arith.divf %112, %113 : vector<8x1xf32>
    %115 = vector.broadcast %114 : vector<8x1xf32> to vector<8x32xf32>
    %116 = arith.subf %106, %115 : vector<8x32xf32>
    %117 = arith.mulf %116, %116 : vector<8x32xf32>
    %cst_44 = arith.constant dense<0.000000e+00> : vector<8xf32>
    %118 = vector.multi_reduction <add>, %117, %cst_44 [1] : vector<8x32xf32> to vector<8xf32>
    %119 = vector.shape_cast %118 : vector<8xf32> to vector<8x1xf32>
    %cst_45 = arith.constant 3.200000e+01 : f32
    %120 = vector.broadcast %cst_45 : f32 to vector<8x1xf32>
    %121 = arith.divf %119, %120 : vector<8x1xf32>
    %cst_46 = arith.constant 9.99999974E-6 : f32
    %122 = vector.broadcast %cst_46 : f32 to vector<8x1xf32>
    %123 = arith.addf %121, %122 : vector<8x1xf32>
    %124 = math.rsqrt %123 : vector<8x1xf32>
    %125 = vector.broadcast %124 : vector<8x1xf32> to vector<8x32xf32>
    %126 = arith.mulf %116, %125 : vector<8x32xf32>
    %127 = vector.broadcast %108 : vector<1x32xf32> to vector<8x32xf32>
    %128 = arith.mulf %126, %127 : vector<8x32xf32>
    %129 = vector.broadcast %110 : vector<1x32xf32> to vector<8x32xf32>
    %130 = arith.addf %128, %129 : vector<8x32xf32>
    %131 = arith.truncf %130 : vector<8x32xf32> to vector<8x32xbf16>
    %c0_47 = arith.constant 0 : index
    %c0_48 = arith.constant 0 : index
    %c0_49 = arith.constant 0 : index
    %132 = vector.load %arg9[%c0_47, %c0_48, %c0_49] : memref<1x32x64xbf16, #tpu.memory_space<vmem>>, vector<1x32x64xbf16>
    %133 = vector.shape_cast %132 : vector<1x32x64xbf16> to vector<32x64xbf16>
    %cst_50 = arith.constant dense<0.000000e+00> : vector<8x64xf32>
    %134 = tpu.matmul %131, %133, %cst_50 {dimension_numbers = #tpu.dot_dimension_numbers<[1], [0], [0], [1], [0, 0, 1, 1], [], []>} : vector<8x32xbf16>, vector<32x64xbf16>, vector<8x64xf32> -> vector<8x64xf32>
    %c0_51 = arith.constant 0 : index
    %c0_52 = arith.constant 0 : index
    %c0_53 = arith.constant 0 : index
    %135 = vector.load %arg10[%c0_51, %c0_52, %c0_53] : memref<1x1x64xf32, #tpu.memory_space<vmem>>, vector<1x1x64xf32>
    %136 = vector.shape_cast %135 : vector<1x1x64xf32> to vector<1x64xf32>
    %137 = vector.broadcast %136 : vector<1x64xf32> to vector<8x64xf32>
    %138 = arith.addf %134, %137 : vector<8x64xf32>
    %cst_54 = arith.constant 0.000000e+00 : f32
    %139 = vector.broadcast %cst_54 : f32 to vector<8x64xf32>
    %140 = arith.maximumf %138, %139 : vector<8x64xf32>
    %141 = arith.truncf %140 : vector<8x64xf32> to vector<8x64xbf16>
    %c0_55 = arith.constant 0 : index
    %c0_56 = arith.constant 0 : index
    %c0_57 = arith.constant 0 : index
    %142 = vector.load %arg11[%c0_55, %c0_56, %c0_57] : memref<1x64x32xbf16, #tpu.memory_space<vmem>>, vector<1x64x32xbf16>
    %143 = vector.shape_cast %142 : vector<1x64x32xbf16> to vector<64x32xbf16>
    %cst_58 = arith.constant dense<0.000000e+00> : vector<8x32xf32>
    %144 = tpu.matmul %141, %143, %cst_58 {dimension_numbers = #tpu.dot_dimension_numbers<[1], [0], [0], [1], [0, 0, 1, 1], [], []>} : vector<8x64xbf16>, vector<64x32xbf16>, vector<8x32xf32> -> vector<8x32xf32>
    %c0_59 = arith.constant 0 : index
    %c0_60 = arith.constant 0 : index
    %c0_61 = arith.constant 0 : index
    %145 = vector.load %arg12[%c0_59, %c0_60, %c0_61] : memref<1x1x32xf32, #tpu.memory_space<vmem>>, vector<1x1x32xf32>
    %146 = vector.shape_cast %145 : vector<1x1x32xf32> to vector<1x32xf32>
    %147 = vector.broadcast %146 : vector<1x32xf32> to vector<8x32xf32>
    %148 = arith.addf %144, %147 : vector<8x32xf32>
    %149 = arith.addf %130, %148 : vector<8x32xf32>
    %c0_62 = arith.constant 0 : index
    %c0_63 = arith.constant 0 : index
    %c0_64 = arith.constant 0 : index
    %150 = vector.load %arg13[%c0_62, %c0_63, %c0_64] : memref<1x1x32xf32, #tpu.memory_space<vmem>>, vector<1x1x32xf32>
    %151 = vector.shape_cast %150 : vector<1x1x32xf32> to vector<1x32xf32>
    %c0_65 = arith.constant 0 : index
    %c0_66 = arith.constant 0 : index
    %c0_67 = arith.constant 0 : index
    %152 = vector.load %arg14[%c0_65, %c0_66, %c0_67] : memref<1x1x32xf32, #tpu.memory_space<vmem>>, vector<1x1x32xf32>
    %153 = vector.shape_cast %152 : vector<1x1x32xf32> to vector<1x32xf32>
    %cst_68 = arith.constant dense<0.000000e+00> : vector<8xf32>
    %154 = vector.multi_reduction <add>, %149, %cst_68 [1] : vector<8x32xf32> to vector<8xf32>
    %155 = vector.shape_cast %154 : vector<8xf32> to vector<8x1xf32>
    %cst_69 = arith.constant 3.200000e+01 : f32
    %156 = vector.broadcast %cst_69 : f32 to vector<8x1xf32>
    %157 = arith.divf %155, %156 : vector<8x1xf32>
    %158 = vector.broadcast %157 : vector<8x1xf32> to vector<8x32xf32>
    %159 = arith.subf %149, %158 : vector<8x32xf32>
    %160 = arith.mulf %159, %159 : vector<8x32xf32>
    %cst_70 = arith.constant dense<0.000000e+00> : vector<8xf32>
    %161 = vector.multi_reduction <add>, %160, %cst_70 [1] : vector<8x32xf32> to vector<8xf32>
    %162 = vector.shape_cast %161 : vector<8xf32> to vector<8x1xf32>
    %cst_71 = arith.constant 3.200000e+01 : f32
    %163 = vector.broadcast %cst_71 : f32 to vector<8x1xf32>
    %164 = arith.divf %162, %163 : vector<8x1xf32>
    %cst_72 = arith.constant 9.99999974E-6 : f32
    %165 = vector.broadcast %cst_72 : f32 to vector<8x1xf32>
    %166 = arith.addf %164, %165 : vector<8x1xf32>
    %167 = math.rsqrt %166 : vector<8x1xf32>
    %168 = vector.broadcast %167 : vector<8x1xf32> to vector<8x32xf32>
    %169 = arith.mulf %159, %168 : vector<8x32xf32>
    %170 = vector.broadcast %151 : vector<1x32xf32> to vector<8x32xf32>
    %171 = arith.mulf %169, %170 : vector<8x32xf32>
    %172 = vector.broadcast %153 : vector<1x32xf32> to vector<8x32xf32>
    %173 = arith.addf %171, %172 : vector<8x32xf32>
    %c0_73 = arith.constant 0 : index
    %c0_74 = arith.constant 0 : index
    %c0_75 = arith.constant 0 : index
    %174 = vector.load %arg15[%c0_73, %c0_74, %c0_75] : memref<1x8x32xf32, #tpu.memory_space<vmem>>, vector<1x8x32xf32>
    %175 = vector.shape_cast %174 : vector<1x8x32xf32> to vector<8x32xf32>
    %176 = vector.shape_cast %173 : vector<8x32xf32> to vector<1x8x32xf32>
    tpu.vector_store %arg15[%c0_73, %c0_74, %c0_75], %176 {strides = array<i32>} : memref<1x8x32xf32, #tpu.memory_space<vmem>>, vector<1x8x32xf32>,
    return
  }
  func.func @transform_0(%arg0: i32, %arg1: i32) -> (i32, i32, i32) {
    %c0_i32 = arith.constant 0 : i32
    %c0_i32_0 = arith.constant 0 : i32
    %c0_i32_1 = arith.constant 0 : i32
    return %arg0, %c0_i32, %c0_i32_0 : i32, i32, i32
  }
  func.func @transform_1(%arg0: i32, %arg1: i32) -> (i32, i32, i32) {
    %c0_i32 = arith.constant 0 : i32
    %c0_i32_0 = arith.constant 0 : i32
    %c0_i32_1 = arith.constant 0 : i32
    return %arg1, %c0_i32, %c0_i32_0 : i32, i32, i32
  }
  func.func @transform_2(%arg0: i32, %arg1: i32) -> (i32, i32, i32) {
    %c0_i32 = arith.constant 0 : i32
    %c0_i32_0 = arith.constant 0 : i32
    %c0_i32_1 = arith.constant 0 : i32
    return %arg1, %c0_i32, %c0_i32_0 : i32, i32, i32
  }
  func.func @transform_3(%arg0: i32, %arg1: i32) -> (i32, i32, i32) {
    %c0_i32 = arith.constant 0 : i32
    %c0_i32_0 = arith.constant 0 : i32
    %c0_i32_1 = arith.constant 0 : i32
    return %arg1, %c0_i32, %c0_i32_0 : i32, i32, i32
  }
  func.func @transform_4(%arg0: i32, %arg1: i32) -> (i32, i32, i32) {
    %c0_i32 = arith.constant 0 : i32
    %c0_i32_0 = arith.constant 0 : i32
    %c0_i32_1 = arith.constant 0 : i32
    return %arg1, %c0_i32, %c0_i32_0 : i32, i32, i32
  }
  func.func @transform_5(%arg0: i32, %arg1: i32) -> (i32, i32, i32) {
    %c0_i32 = arith.constant 0 : i32
    %c0_i32_0 = arith.constant 0 : i32
    %c0_i32_1 = arith.constant 0 : i32
    return %arg1, %c0_i32, %c0_i32_0 : i32, i32, i32
  }
  func.func @transform_6(%arg0: i32, %arg1: i32) -> (i32, i32, i32) {
    %c0_i32 = arith.constant 0 : i32
    %c0_i32_0 = arith.constant 0 : i32
    %c0_i32_1 = arith.constant 0 : i32
    return %arg1, %c0_i32, %c0_i32_0 : i32, i32, i32
  }
  func.func @transform_7(%arg0: i32, %arg1: i32) -> (i32, i32, i32) {
    %c0_i32 = arith.constant 0 : i32
    %c0_i32_0 = arith.constant 0 : i32
    %c0_i32_1 = arith.constant 0 : i32
    return %arg1, %c0_i32, %c0_i32_0 : i32, i32, i32
  }
  func.func @transform_8(%arg0: i32, %arg1: i32) -> (i32, i32, i32) {
    %c0_i32 = arith.constant 0 : i32
    %c0_i32_0 = arith.constant 0 : i32
    %c0_i32_1 = arith.constant 0 : i32
    return %arg1, %c0_i32, %c0_i32_0 : i32, i32, i32
  }
  func.func @transform_9(%arg0: i32, %arg1: i32) -> (i32, i32, i32) {
    %c0_i32 = arith.constant 0 : i32
    %c0_i32_0 = arith.constant 0 : i32
    %c0_i32_1 = arith.constant 0 : i32
    return %arg1, %c0_i32, %c0_i32_0 : i32, i32, i32
  }
  func.func @transform_10(%arg0: i32, %arg1: i32) -> (i32, i32, i32) {
    %c0_i32 = arith.constant 0 : i32
    %c0_i32_0 = arith.constant 0 : i32
    %c0_i32_1 = arith.constant 0 : i32
    return %arg1, %c0_i32, %c0_i32_0 : i32, i32, i32
  }
  func.func @transform_11(%arg0: i32, %arg1: i32) -> (i32, i32, i32) {
    %c0_i32 = arith.constant 0 : i32
    %c0_i32_0 = arith.constant 0 : i32
    %c0_i32_1 = arith.constant 0 : i32
    return %arg1, %c0_i32, %c0_i32_0 : i32, i32, i32
  }
  func.func @transform_12(%arg0: i32, %arg1: i32) -> (i32, i32, i32) {
    %c0_i32 = arith.constant 0 : i32
    %c0_i32_0 = arith.constant 0 : i32
    %c0_i32_1 = arith.constant 0 : i32
    return %arg1, %c0_i32, %c0_i32_0 : i32, i32, i32
  }
  func.func @transform_13(%arg0: i32, %arg1: i32) -> (i32, i32, i32) {
    %c0_i32 = arith.constant 0 : i32
    %c0_i32_0 = arith.constant 0 : i32
    %c0_i32_1 = arith.constant 0 : i32
    return %arg0, %c0_i32, %c0_i32_0 : i32, i32, i32
  }
}

module attributes {stable_mosaic.version = 11 : i64} {
  func.func @vocab_head_kernel(%arg0: i32, %arg1: i32, %arg2: memref<16x32xf32, #tpu.memory_space<vmem>>, %arg3: memref<32x128xbf16, #tpu.memory_space<vmem>>, %arg4: memref<1x128xf32, #tpu.memory_space<vmem>>, %arg5: memref<16x128xf32, #tpu.memory_space<vmem>>) attributes {dimension_semantics = [#tpu.dimension_semantics<parallel>, #tpu.dimension_semantics<parallel>], iteration_bounds = array<i64: 1, 1>, scalar_prefetch = 0 : i64, scratch_operands = 0 : i64, tpu.core_type = #tpu.core_type<tc>, window_params = [{transform_indices = @transform_0, window_bounds = array<i64: 16, 32>}, {transform_indices = @transform_1, window_bounds = array<i64: 32, 128>}, {transform_indices = @transform_2, window_bounds = array<i64: 1, 128>}, {transform_indices = @transform_3, window_bounds = array<i64: 16, 128>}]} {
    %c0 = arith.constant 0 : index
    %c0_0 = arith.constant 0 : index
    %0 = vector.load %arg2[%c0, %c0_0] : memref<16x32xf32, #tpu.memory_space<vmem>>, vector<16x32xf32>
    %1 = arith.truncf %0 : vector<16x32xf32> to vector<16x32xbf16>
    %c0_1 = arith.constant 0 : index
    %c0_2 = arith.constant 0 : index
    %2 = vector.load %arg3[%c0_1, %c0_2] : memref<32x128xbf16, #tpu.memory_space<vmem>>, vector<32x128xbf16>
    %cst = arith.constant dense<0.000000e+00> : vector<16x128xf32>
    %3 = tpu.matmul %1, %2, %cst {dimension_numbers = #tpu.dot_dimension_numbers<[1], [0], [0], [1], [0, 0, 1, 1], [], []>} : vector<16x32xbf16>, vector<32x128xbf16>, vector<16x128xf32> -> vector<16x128xf32>
    %c0_3 = arith.constant 0 : index
    %c0_4 = arith.constant 0 : index
    %4 = vector.load %arg4[%c0_3, %c0_4] : memref<1x128xf32, #tpu.memory_space<vmem>>, vector<1x128xf32>
    %5 = vector.broadcast %4 : vector<1x128xf32> to vector<16x128xf32>
    %6 = arith.addf %3, %5 : vector<16x128xf32>
    %c0_5 = arith.constant 0 : index
    %c0_6 = arith.constant 0 : index
    %7 = vector.load %arg5[%c0_5, %c0_6] : memref<16x128xf32, #tpu.memory_space<vmem>>, vector<16x128xf32>
    tpu.vector_store %arg5[%c0_5, %c0_6], %6 {strides = array<i32>} : memref<16x128xf32, #tpu.memory_space<vmem>>, vector<16x128xf32>,
    return
  }
  func.func @transform_0(%arg0: i32, %arg1: i32) -> (i32, i32) {
    %c0_i32 = arith.constant 0 : i32
    %c0_i32_0 = arith.constant 0 : i32
    return %arg0, %c0_i32 : i32, i32
  }
  func.func @transform_1(%arg0: i32, %arg1: i32) -> (i32, i32) {
    %c0_i32 = arith.constant 0 : i32
    %c0_i32_0 = arith.constant 0 : i32
    return %c0_i32, %arg1 : i32, i32
  }
  func.func @transform_2(%arg0: i32, %arg1: i32) -> (i32, i32) {
    %c0_i32 = arith.constant 0 : i32
    %c0_i32_0 = arith.constant 0 : i32
    return %c0_i32, %arg1 : i32, i32
  }
  func.func @transform_3(%arg0: i32, %arg1: i32) -> (i32, i32) {
    %c0_i32 = arith.constant 0 : i32
    return %arg0, %arg1 : i32, i32
  }
}

</mosaic_0001>

<llo_original>
// kernel: _lambda_.3
$region0: #{_lambda_.3}
  #allocation0 [shape = 'u32[]', space=smem, size = 0x4, offset = 0x4, fixed_abs, tag = 'smem constant byte address 0x4 - core index']
  #allocation1 [shape = 'u32[144,128]{1,0:T(1,128)}', space=vmem, size = 0x12000, scoped, tag = 'internal scratch']
  %s0 = inlined_call_operand.vmem [shape: f32[16,32], index: 0, kind: input, shape index: {}]
  %s1 = inlined_call_operand.vmem [shape: bf16[32,128], index: 1, kind: input, shape index: {}]
  %s2 = inlined_call_operand.vmem [shape: f32[1,128], index: 2, kind: input, shape index: {}]
  %s3 = inlined_call_operand.hbm [shape: f32[16,128], index: 3, kind: output, shape index: {}]
  %s4 = sld [smem:[#allocation0]]
  $region22: #{_lambda_.3} parent=0
    _
  %s6 = ssub.s32 1, %s4
  %s7 = scalar_select 0, %s6, %s4
  $region1: #{_lambda_.3} parent=0
    #allocation2 [shape = 'u8[8192]{0}', space=vmem, size = 0x2000, scoped, tag = 'output window, operand 0, single buffered']
    #allocation3 [shape = 's32[1]{0}', space=sflag, size = 0x4, scoped, tag = 'scoped memory for _lambda_.3']
    %8 = vsyncpa [#allocation3], 0
    // Predicated region
    $region2: #{_lambda_.3} parent=1 // pred_check
      _
    $region3: #{_lambda_.3} parent=1 // pred_check_branch
      %10 = sbr.rel (0) target = $region5
    $region4: #{_lambda_.3} parent=1 // pred_region
      _
    $region5: #{_lambda_.3} parent=1 // pred_fallthru
      _
    // Predicated region
    $region6: #{_lambda_.3} parent=1 // pred_check
      _
    $region7: #{_lambda_.3} parent=1 // pred_check_branch
      %12 = sbr.rel (0) target = $region9
    $region8: #{_lambda_.3} parent=1 // pred_region
      _
    $region9: #{_lambda_.3} parent=1 // pred_fallthru
      _
    // Predicated region
    $region10: #{_lambda_.3} parent=1 // pred_check
      _
    $region11: #{_lambda_.3} parent=1 // pred_check_branch
      %14 = sbr.rel (0) target = $region13
    $region12: #{_lambda_.3} parent=1 // pred_region
      _
    $region13: #{_lambda_.3} parent=1 // pred_fallthru
      _
    %v16 = vld [vmem:[%s0] sm:$0xff]
    %v17 = vld [vmem:[%s0 + $0x8] sm:$0xff]
    %v18 = vpack.c.bf16 %v17, %v16
    %v19 = vld [vmem:[%s1] sm:$0xf]
    %v20 = vld [vmem:[%s1 + $0x4] sm:$0xf]
    %v21 = vld [vmem:[%s1 + $0x8] sm:$0xf]
    %v22 = vld [vmem:[%s1 + $0xc] sm:$0xf]
    %v23 = vld [vmem:[%s2] sm:$0x1]
    %v25 = vlaneseq
    %v26 = vshrl.u32 %v25, 7
    %v27 = vsub.s32 0, %v26
    %v28 = vrot.slane %v23, %v27
    %v34 = vunpack.c.l.b16 %v19
    %v35 = vunpack.c.l.b16 %v20
    %v36 = vunpack.c.l.b16 %v21
    %v37 = vunpack.c.l.b16 %v22
    %v38 = vpack.c.b16 %v35, %v34
    %v39 = vpack.c.b16 %v37, %v36
    %vm42 = vcmask 261120
    %v44 = vsel %vm42, %v18, 0
    %46 = vmatprep.subr.bf16.mxu0 0
    %47 = vmatpush1.bf16.msra.mxu0 %v38
    %48 = vmatprep.subr.bf16.mxu0 0
    %49 = vmatpush1.bf16.msra.mxu0 %v39
    %50 = vmatprep.subr.bf16.mxu0 0
    %51 = vmatpush1.bf16.msra.mxu0 0
    %52 = vmatprep.subr.bf16.mxu0 0
    %53 = vmatpush1.bf16.msra.mxu0 0
    %54 = vmatprep.subr.bf16.mxu0 0
    %55 = vmatpush1.bf16.msra.mxu0 0
    %56 = vmatprep.subr.bf16.mxu0 0
    %57 = vmatpush1.bf16.msra.mxu0 0
    %58 = vmatprep.subr.bf16.mxu0 0
    %59 = vmatpush1.bf16.msra.mxu0 0
    %60 = vmatprep.subr.bf16.mxu0 0
    %61 = vmatpush1.bf16.msra.mxu0 0
    %62 = vmatprep.subr.bf16.mxu0 0
    %63 = vmatpush1.bf16.msra.mxu0 0
    %64 = vmatprep.subr.bf16.mxu0 0
    %65 = vmatpush1.bf16.msra.mxu0 0
    %66 = vmatprep.subr.bf16.mxu0 0
    %67 = vmatpush1.bf16.msra.mxu0 0
    %68 = vmatprep.subr.bf16.mxu0 0
    %69 = vmatpush1.bf16.msra.mxu0 0
    %70 = vmatprep.subr.bf16.mxu0 0
    %71 = vmatpush1.bf16.msra.mxu0 0
    %72 = vmatprep.subr.bf16.mxu0 0
    %73 = vmatpush1.bf16.msra.mxu0 0
    %74 = vmatprep.subr.bf16.mxu0 0
    %75 = vmatpush1.bf16.msra.mxu0 0
    %76 = vmatprep.subr.bf16.mxu0 0
    %77 = vmatpush1.bf16.msra.mxu0 0
    %78 = vmatprep.mubr.bf16.mxu0 0
    %79 = vmatmul.mubr.bf16.gmra.mrb[0].mxu0 %v44
    %v80 = vpop.f32.mrb[0].mxu0
    %v81 = vadd.f32 %v28, %v80
    %v82 = vpop.f32.mrb[0].mxu0
    %v83 = vpop.f32.mrb[0].mxu0
    %v84 = vadd.f32 %v28, %v83
    %v85 = vpop.f32.mrb[0].mxu0
    %86 = vdwg.mxu0
    %87 = vst [vmem:[#allocation2] sm:$0xff] %v81
    %88 = vst [vmem:[#allocation2 + $0x8] sm:$0xff] %v84
    // Predicated region
    $region14: #{_lambda_.3} parent=1 // pred_check
      _
    $region15: #{_lambda_.3} parent=1 // pred_check_branch
      %90 = sbr.rel (0) target = $region17
    $region16: #{_lambda_.3} parent=1 // pred_region
      %s92 = ssub.s32 256, 256
      %93 = vsyncadd [#allocation3], %s92
      %s94 = sshll.u32 [#allocation2], 4
      %s95 = int_to_ptr.vmem [resolvable:$true] %s94
      %100 = dma.vmem_to_hbm [thread:$0]  %s95, 256, %s3, [#allocation3], 128, 128, 8
    $region17: #{_lambda_.3} parent=1 // pred_fallthru
      _
    // Predicated region
    $region18: #{_lambda_.3} parent=1 // pred_check
      _
    $region19: #{_lambda_.3} parent=1 // pred_check_branch
      %102 = sbr.rel (0) target = $region21
    $region20: #{_lambda_.3} parent=1 // pred_region
      %103 = dma.done [#allocation3], 256
    $region21: #{_lambda_.3} parent=1 // pred_fallthru
      _
    %104 = vsyncpa [#allocation3], 1

// kernel: _lambda_.2
$region0: #{_lambda_.2}
  #allocation0 [shape = 'u32[]', space=smem, size = 0x4, offset = 0x4, fixed_abs, tag = 'smem constant byte address 0x4 - core index']
  #allocation1 [shape = 'u32[144,128]{1,0:T(1,128)}', space=vmem, size = 0x12000, scoped, tag = 'internal scratch']
  %s0 = inlined_call_operand.vmem [shape: f32[2,8,32], index: 0, kind: input, shape index: {}]
  %s1 = inlined_call_operand.vmem [shape: bf16[2,32,96], index: 1, kind: input, shape index: {}]
  %s2 = inlined_call_operand.vmem [shape: f32[2,1,96], index: 2, kind: input, shape index: {}]
  %s3 = inlined_call_operand.vmem [shape: bf16[2,32,32], index: 3, kind: input, shape index: {}]
  %s4 = inlined_call_operand.vmem [shape: f32[2,1,32], index: 4, kind: input, shape index: {}]
  %s5 = inlined_call_operand.vmem [shape: f32[2,1,32], index: 5, kind: input, shape index: {}]
  %s6 = inlined_call_operand.vmem [shape: f32[2,1,32], index: 6, kind: input, shape index: {}]
  %s7 = inlined_call_operand.vmem [shape: bf16[2,32,64], index: 7, kind: input, shape index: {}]
  %s8 = inlined_call_operand.vmem [shape: f32[2,1,64], index: 8, kind: input, shape index: {}]
  %s9 = inlined_call_operand.vmem [shape: bf16[2,64,32], index: 9, kind: input, shape index: {}]
  %s10 = inlined_call_operand.vmem [shape: f32[2,1,32], index: 10, kind: input, shape index: {}]
  %s11 = inlined_call_operand.vmem [shape: f32[2,1,32], index: 11, kind: input, shape index: {}]
  %s12 = inlined_call_operand.vmem [shape: f32[2,1,32], index: 12, kind: input, shape index: {}]
  %s13 = inlined_call_operand.vmem [shape: f32[2,8,32], index: 13, kind: output, shape index: {}]
  %s14 = sld [smem:[#allocation0]]
  $region89: #{_lambda_.2} parent=0
    _
  %s16 = ssub.s32 1, %s14
  %s17 = scalar_select 0, %s16, %s14
  loop: start=0, step=1, limit=6
  $region2: #{_lambda_.2} parent=0 // loop_pre_header
    _
  $region3: #{_lambda_.2} parent=0 // loop_header
    %s19 = sphi 0, %s23
    %p20 = scmp.ge.s32.totalorder %s19, 6
    %s26 = sphi 0, %s38
    %s27 = sphi 0, %s34
    %s28 = sphi 0, %s26
    %s29 = sphi 0, %s27
    %s30 = sphi 0, %s28
    %s31 = sphi 0, %s29
    %s41 = sphi 0, %s43
    %s44 = sphi 0, %s41
    %s45 = sphi 0, %s44
    %s61 = sphi 0, %s45
    %s67 = sphi 0, %s69
    %s70 = sphi 0, %s67
    %s71 = sphi 0, %s70
    %s87 = sphi 0, %s71
    %s93 = sphi 0, %s95
    %s96 = sphi 0, %s93
    %s97 = sphi 0, %s96
    %s113 = sphi 0, %s97
    %s119 = sphi 0, %s121
    %s122 = sphi 0, %s119
    %s123 = sphi 0, %s122
    %s139 = sphi 0, %s123
    %s145 = sphi 0, %s147
    %s148 = sphi 0, %s145
    %s149 = sphi 0, %s148
    %s165 = sphi 0, %s149
    %s171 = sphi 0, %s173
    %s174 = sphi 0, %s171
    %s175 = sphi 0, %s174
    %s191 = sphi 0, %s175
    %s197 = sphi 0, %s199
    %s200 = sphi 0, %s197
    %s201 = sphi 0, %s200
    %s217 = sphi 0, %s201
    %s223 = sphi 0, %s225
    %s226 = sphi 0, %s223
    %s227 = sphi 0, %s226
    %s243 = sphi 0, %s227
    %s249 = sphi 0, %s251
    %s252 = sphi 0, %s249
    %s253 = sphi 0, %s252
    %s269 = sphi 0, %s253
    %s275 = sphi 0, %s277
    %s278 = sphi 0, %s275
    %s279 = sphi 0, %s278
    %s295 = sphi 0, %s279
    %s301 = sphi 0, %s303
    %s304 = sphi 0, %s301
    %s305 = sphi 0, %s304
    %s321 = sphi 0, %s305
    %s327 = sphi 0, %s329
    %s330 = sphi 0, %s327
    %s331 = sphi 0, %s330
    %s347 = sphi 0, %s331
    %s353 = sphi 0, %s355
    %s356 = sphi 0, %s353
    %s357 = sphi 0, %s356
    %s373 = sphi 0, %s357
    %s379 = sphi 0, %s381
    %s382 = sphi 0, %s379
    %s383 = sphi 0, %s382
    %s399 = sphi 0, %s383
  $region4: #{_lambda_.2} parent=0 // loop_header_branch
    %22 = sbr.rel (%p20) target = $region8
  $region5: #{_lambda_.2} parent=0 // loop_body
    %s24 = ssub.s32 %s19, 1
    %s25 = ssub.s32 %s19, 2
    %s32 = sadd.s32 1, %s27
    %p33 = scmp.ge.s32.totalorder %s32, 2
    %s34 = scalar_select %p33, 0, %s32
    %s35 = sadd.s32 1, %s26
    %s36 = scalar_select %p33, %s35, %s26
    %p37 = scmp.ge.s32.totalorder %s36, 2
    %s38 = scalar_select %p37, 0, %s36
    %s39 = ssub.s32 %s26, %s38
    %p40 = scmp.eq.s32.totalorder %s39, 0
    %s42 = sadd.s32 %s41, 1
    %s43 = scalar_select %p40, %s41, %s42
    %p46 = pneg %p40
    %p47 = scmp.eq.s32.totalorder %s19, 3
    %p48 = por %p46, %p47
    %p49 = scmp.ne.s32.totalorder %s41, %s44
    %p50 = scmp.eq.s32.totalorder %s19, 0
    %p51 = por %p49, %p50
    %p52 = scmp.ne.s32.totalorder %s41, %s44
    %p53 = scmp.eq.s32.totalorder %s24, 3
    %p54 = por %p52, %p53
    %p55 = scmp.ne.s32.totalorder %s44, %s45
    %p56 = scmp.eq.s32.totalorder %s24, 0
    %p57 = por %p55, %p56
    %p58 = scmp.ne.s32.totalorder %s44, %s45
    %p59 = scmp.eq.s32.totalorder %s25, 3
    %p60 = por %p58, %p59
    %p62 = scmp.ne.s32.totalorder %s45, %s61
    %p63 = scmp.eq.s32.totalorder %s25, 0
    %p64 = por %p62, %p63
    %s65 = ssub.s32 %s27, %s34
    %p66 = scmp.eq.s32.totalorder %s65, 0
    %s68 = sadd.s32 %s67, 1
    %s69 = scalar_select %p66, %s67, %s68
    %p72 = pneg %p66
    %p73 = scmp.eq.s32.totalorder %s19, 3
    %p74 = por %p72, %p73
    %p75 = scmp.ne.s32.totalorder %s67, %s70
    %p76 = scmp.eq.s32.totalorder %s19, 0
    %p77 = por %p75, %p76
    %p78 = scmp.ne.s32.totalorder %s67, %s70
    %p79 = scmp.eq.s32.totalorder %s24, 3
    %p80 = por %p78, %p79
    %p81 = scmp.ne.s32.totalorder %s70, %s71
    %p82 = scmp.eq.s32.totalorder %s24, 0
    %p83 = por %p81, %p82
    %p84 = scmp.ne.s32.totalorder %s70, %s71
    %p85 = scmp.eq.s32.totalorder %s25, 3
    %p86 = por %p84, %p85
    %p88 = scmp.ne.s32.totalorder %s71, %s87
    %p89 = scmp.eq.s32.totalorder %s25, 0
    %p90 = por %p88, %p89
    %s91 = ssub.s32 %s27, %s34
    %p92 = scmp.eq.s32.totalorder %s91, 0
    %s94 = sadd.s32 %s93, 1
    %s95 = scalar_select %p92, %s93, %s94
    %p98 = pneg %p92
    %p99 = scmp.eq.s32.totalorder %s19, 3
    %p100 = por %p98, %p99
    %p101 = scmp.ne.s32.totalorder %s93, %s96
    %p102 = scmp.eq.s32.totalorder %s19, 0
    %p103 = por %p101, %p102
    %p104 = scmp.ne.s32.totalorder %s93, %s96
    %p105 = scmp.eq.s32.totalorder %s24, 3
    %p106 = por %p104, %p105
    %p107 = scmp.ne.s32.totalorder %s96, %s97
    %p108 = scmp.eq.s32.totalorder %s24, 0
    %p109 = por %p107, %p108
    %p110 = scmp.ne.s32.totalorder %s96, %s97
    %p111 = scmp.eq.s32.totalorder %s25, 3
    %p112 = por %p110, %p111
    %p114 = scmp.ne.s32.totalorder %s97, %s113
    %p115 = scmp.eq.s32.totalorder %s25, 0
    %p116 = por %p114, %p115
    %s117 = ssub.s32 %s27, %s34
    %p118 = scmp.eq.s32.totalorder %s117, 0
    %s120 = sadd.s32 %s119, 1
    %s121 = scalar_select %p118, %s119, %s120
    %p124 = pneg %p118
    %p125 = scmp.eq.s32.totalorder %s19, 3
    %p126 = por %p124, %p125
    %p127 = scmp.ne.s32.totalorder %s119, %s122
    %p128 = scmp.eq.s32.totalorder %s19, 0
    %p129 = por %p127, %p128
    %p130 = scmp.ne.s32.totalorder %s119, %s122
    %p131 = scmp.eq.s32.totalorder %s24, 3
    %p132 = por %p130, %p131
    %p133 = scmp.ne.s32.totalorder %s122, %s123
    %p134 = scmp.eq.s32.totalorder %s24, 0
    %p135 = por %p133, %p134
    %p136 = scmp.ne.s32.totalorder %s122, %s123
    %p137 = scmp.eq.s32.totalorder %s25, 3
    %p138 = por %p136, %p137
    %p140 = scmp.ne.s32.totalorder %s123, %s139
    %p141 = scmp.eq.s32.totalorder %s25, 0
    %p142 = por %p140, %p141
    %s143 = ssub.s32 %s27, %s34
    %p144 = scmp.eq.s32.totalorder %s143, 0
    %s146 = sadd.s32 %s145, 1
    %s147 = scalar_select %p144, %s145, %s146
    %p150 = pneg %p144
    %p151 = scmp.eq.s32.totalorder %s19, 3
    %p152 = por %p150, %p151
    %p153 = scmp.ne.s32.totalorder %s145, %s148
    %p154 = scmp.eq.s32.totalorder %s19, 0
    %p155 = por %p153, %p154
    %p156 = scmp.ne.s32.totalorder %s145, %s148
    %p157 = scmp.eq.s32.totalorder %s24, 3
    %p158 = por %p156, %p157
    %p159 = scmp.ne.s32.totalorder %s148, %s149
    %p160 = scmp.eq.s32.totalorder %s24, 0
    %p161 = por %p159, %p160
    %p162 = scmp.ne.s32.totalorder %s148, %s149
    %p163 = scmp.eq.s32.totalorder %s25, 3
    %p164 = por %p162, %p163
    %p166 = scmp.ne.s32.totalorder %s149, %s165
    %p167 = scmp.eq.s32.totalorder %s25, 0
    %p168 = por %p166, %p167
    %s169 = ssub.s32 %s27, %s34
    %p170 = scmp.eq.s32.totalorder %s169, 0
    %s172 = sadd.s32 %s171, 1
    %s173 = scalar_select %p170, %s171, %s172
    %p176 = pneg %p170
    %p177 = scmp.eq.s32.totalorder %s19, 3
    %p178 = por %p176, %p177
    %p179 = scmp.ne.s32.totalorder %s171, %s174
    %p180 = scmp.eq.s32.totalorder %s19, 0
    %p181 = por %p179, %p180
    %p182 = scmp.ne.s32.totalorder %s171, %s174
    %p183 = scmp.eq.s32.totalorder %s24, 3
    %p184 = por %p182, %p183
    %p185 = scmp.ne.s32.totalorder %s174, %s175
    %p186 = scmp.eq.s32.totalorder %s24, 0
    %p187 = por %p185, %p186
    %p188 = scmp.ne.s32.totalorder %s174, %s175
    %p189 = scmp.eq.s32.totalorder %s25, 3
    %p190 = por %p188, %p189
    %p192 = scmp.ne.s32.totalorder %s175, %s191
    %p193 = scmp.eq.s32.totalorder %s25, 0
    %p194 = por %p192, %p193
    %s195 = ssub.s32 %s27, %s34
    %p196 = scmp.eq.s32.totalorder %s195, 0
    %s198 = sadd.s32 %s197, 1
    %s199 = scalar_select %p196, %s197, %s198
    %p202 = pneg %p196
    %p203 = scmp.eq.s32.totalorder %s19, 3
    %p204 = por %p202, %p203
    %p205 = scmp.ne.s32.totalorder %s197, %s200
    %p206 = scmp.eq.s32.totalorder %s19, 0
    %p207 = por %p205, %p206
    %p208 = scmp.ne.s32.totalorder %s197, %s200
    %p209 = scmp.eq.s32.totalorder %s24, 3
    %p210 = por %p208, %p209
    %p211 = scmp.ne.s32.totalorder %s200, %s201
    %p212 = scmp.eq.s32.totalorder %s24, 0
    %p213 = por %p211, %p212
    %p214 = scmp.ne.s32.totalorder %s200, %s201
    %p215 = scmp.eq.s32.totalorder %s25, 3
    %p216 = por %p214, %p215
    %p218 = scmp.ne.s32.totalorder %s201, %s217
    %p219 = scmp.eq.s32.totalorder %s25, 0
    %p220 = por %p218, %p219
    %s221 = ssub.s32 %s27, %s34
    %p222 = scmp.eq.s32.totalorder %s221, 0
    %s224 = sadd.s32 %s223, 1
    %s225 = scalar_select %p222, %s223, %s224
    %p228 = pneg %p222
    %p229 = scmp.eq.s32.totalorder %s19, 3
    %p230 = por %p228, %p229
    %p231 = scmp.ne.s32.totalorder %s223, %s226
    %p232 = scmp.eq.s32.totalorder %s19, 0
    %p233 = por %p231, %p232
    %p234 = scmp.ne.s32.totalorder %s223, %s226
    %p235 = scmp.eq.s32.totalorder %s24, 3
    %p236 = por %p234, %p235
    %p237 = scmp.ne.s32.totalorder %s226, %s227
    %p238 = scmp.eq.s32.totalorder %s24, 0
    %p239 = por %p237, %p238
    %p240 = scmp.ne.s32.totalorder %s226, %s227
    %p241 = scmp.eq.s32.totalorder %s25, 3
    %p242 = por %p240, %p241
    %p244 = scmp.ne.s32.totalorder %s227, %s243
    %p245 = scmp.eq.s32.totalorder %s25, 0
    %p246 = por %p244, %p245
    %s247 = ssub.s32 %s27, %s34
    %p248 = scmp.eq.s32.totalorder %s247, 0
    %s250 = sadd.s32 %s249, 1
    %s251 = scalar_select %p248, %s249, %s250
    %p254 = pneg %p248
    %p255 = scmp.eq.s32.totalorder %s19, 3
    %p256 = por %p254, %p255
    %p257 = scmp.ne.s32.totalorder %s249, %s252
    %p258 = scmp.eq.s32.totalorder %s19, 0
    %p259 = por %p257, %p258
    %p260 = scmp.ne.s32.totalorder %s249, %s252
    %p261 = scmp.eq.s32.totalorder %s24, 3
    %p262 = por %p260, %p261
    %p263 = scmp.ne.s32.totalorder %s252, %s253
    %p264 = scmp.eq.s32.totalorder %s24, 0
    %p265 = por %p263, %p264
    %p266 = scmp.ne.s32.totalorder %s252, %s253
    %p267 = scmp.eq.s32.totalorder %s25, 3
    %p268 = por %p266, %p267
    %p270 = scmp.ne.s32.totalorder %s253, %s269
    %p271 = scmp.eq.s32.totalorder %s25, 0
    %p272 = por %p270, %p271
    %s273 = ssub.s32 %s27, %s34
    %p274 = scmp.eq.s32.totalorder %s273, 0
    %s276 = sadd.s32 %s275, 1
    %s277 = scalar_select %p274, %s275, %s276
    %p280 = pneg %p274
    %p281 = scmp.eq.s32.totalorder %s19, 3
    %p282 = por %p280, %p281
    %p283 = scmp.ne.s32.totalorder %s275, %s278
    %p284 = scmp.eq.s32.totalorder %s19, 0
    %p285 = por %p283, %p284
    %p286 = scmp.ne.s32.totalorder %s275, %s278
    %p287 = scmp.eq.s32.totalorder %s24, 3
    %p288 = por %p286, %p287
    %p289 = scmp.ne.s32.totalorder %s278, %s279
    %p290 = scmp.eq.s32.totalorder %s24, 0
    %p291 = por %p289, %p290
    %p292 = scmp.ne.s32.totalorder %s278, %s279
    %p293 = scmp.eq.s32.totalorder %s25, 3
    %p294 = por %p292, %p293
    %p296 = scmp.ne.s32.totalorder %s279, %s295
    %p297 = scmp.eq.s32.totalorder %s25, 0
    %p298 = por %p296, %p297
    %s299 = ssub.s32 %s27, %s34
    %p300 = scmp.eq.s32.totalorder %s299, 0
    %s302 = sadd.s32 %s301, 1
    %s303 = scalar_select %p300, %s301, %s302
    %p306 = pneg %p300
    %p307 = scmp.eq.s32.totalorder %s19, 3
    %p308 = por %p306, %p307
    %p309 = scmp.ne.s32.totalorder %s301, %s304
    %p310 = scmp.eq.s32.totalorder %s19, 0
    %p311 = por %p309, %p310
    %p312 = scmp.ne.s32.totalorder %s301, %s304
    %p313 = scmp.eq.s32.totalorder %s24, 3
    %p314 = por %p312, %p313
    %p315 = scmp.ne.s32.totalorder %s304, %s305
    %p316 = scmp.eq.s32.totalorder %s24, 0
    %p317 = por %p315, %p316
    %p318 = scmp.ne.s32.totalorder %s304, %s305
    %p319 = scmp.eq.s32.totalorder %s25, 3
    %p320 = por %p318, %p319
    %p322 = scmp.ne.s32.totalorder %s305, %s321
    %p323 = scmp.eq.s32.totalorder %s25, 0
    %p324 = por %p322, %p323
    %s325 = ssub.s32 %s27, %s34
    %p326 = scmp.eq.s32.totalorder %s325, 0
    %s328 = sadd.s32 %s327, 1
    %s329 = scalar_select %p326, %s327, %s328
    %p332 = pneg %p326
    %p333 = scmp.eq.s32.totalorder %s19, 3
    %p334 = por %p332, %p333
    %p335 = scmp.ne.s32.totalorder %s327, %s330
    %p336 = scmp.eq.s32.totalorder %s19, 0
    %p337 = por %p335, %p336
    %p338 = scmp.ne.s32.totalorder %s327, %s330
    %p339 = scmp.eq.s32.totalorder %s24, 3
    %p340 = por %p338, %p339
    %p341 = scmp.ne.s32.totalorder %s330, %s331
    %p342 = scmp.eq.s32.totalorder %s24, 0
    %p343 = por %p341, %p342
    %p344 = scmp.ne.s32.totalorder %s330, %s331
    %p345 = scmp.eq.s32.totalorder %s25, 3
    %p346 = por %p344, %p345
    %p348 = scmp.ne.s32.totalorder %s331, %s347
    %p349 = scmp.eq.s32.totalorder %s25, 0
    %p350 = por %p348, %p349
    %s351 = ssub.s32 %s27, %s34
    %p352 = scmp.eq.s32.totalorder %s351, 0
    %s354 = sadd.s32 %s353, 1
    %s355 = scalar_select %p352, %s353, %s354
    %p358 = pneg %p352
    %p359 = scmp.eq.s32.totalorder %s19, 3
    %p360 = por %p358, %p359
    %p361 = scmp.ne.s32.totalorder %s353, %s356
    %p362 = scmp.eq.s32.totalorder %s19, 0
    %p363 = por %p361, %p362
    %p364 = scmp.ne.s32.totalorder %s353, %s356
    %p365 = scmp.eq.s32.totalorder %s24, 3
    %p366 = por %p364, %p365
    %p367 = scmp.ne.s32.totalorder %s356, %s357
    %p368 = scmp.eq.s32.totalorder %s24, 0
    %p369 = por %p367, %p368
    %p370 = scmp.ne.s32.totalorder %s356, %s357
    %p371 = scmp.eq.s32.totalorder %s25, 3
    %p372 = por %p370, %p371
    %p374 = scmp.ne.s32.totalorder %s357, %s373
    %p375 = scmp.eq.s32.totalorder %s25, 0
    %p376 = por %p374, %p375
    %s377 = ssub.s32 %s26, %s38
    %p378 = scmp.eq.s32.totalorder %s377, 0
    %s380 = sadd.s32 %s379, 1
    %s381 = scalar_select %p378, %s379, %s380
    %p384 = pneg %p378
    %p385 = scmp.eq.s32.totalorder %s19, 3
    %p386 = por %p384, %p385
    %p387 = scmp.ne.s32.totalorder %s379, %s382
    %p388 = scmp.eq.s32.totalorder %s19, 0
    %p389 = por %p387, %p388
    %p390 = scmp.ne.s32.totalorder %s379, %s382
    %p391 = scmp.eq.s32.totalorder %s24, 3
    %p392 = por %p390, %p391
    %p393 = scmp.ne.s32.totalorder %s382, %s383
    %p394 = scmp.eq.s32.totalorder %s24, 0
    %p395 = por %p393, %p394
    %p396 = scmp.ne.s32.totalorder %s382, %s383
    %p397 = scmp.eq.s32.totalorder %s25, 3
    %p398 = por %p396, %p397
    %p400 = scmp.ne.s32.totalorder %s383, %s399
    %p401 = scmp.eq.s32.totalorder %s25, 0
    %p402 = por %p400, %p401
    %p403 = scmp.le.s32.totalorder 1, %s19
    %p404 = scmp.lt.s32.totalorder %s19, 5
    %p405 = pnand %p403, %p404
    %p406 = pneg %p405
    // Predicated region
    $region9: #{_lambda_.2} parent=5 // pred_check
      _
    $region10: #{_lambda_.2} parent=5 // pred_check_branch
      %408 = sbr.rel (%p405) target = $region12
    $region11: #{_lambda_.2} parent=5 // pred_region
      %s409 = ssub.s32 %s19, 1
    $region12: #{_lambda_.2} parent=5 // pred_fallthru
      _
    %p410 = scmp.lt.s32.totalorder %s19, 4
    // Predicated region
    $region13: #{_lambda_.2} parent=5 // pred_check
      %p411 = pneg %p410
    $region14: #{_lambda_.2} parent=5 // pred_check_branch
      %413 = sbr.rel (%p411) target = $region16
    $region15: #{_lambda_.2} parent=5 // pred_region
      // Predicated region
      $region17: #{_lambda_.2} parent=15 // pred_check
        %p414 = pneg %p51
      $region18: #{_lambda_.2} parent=15 // pred_check_branch
        %416 = sbr.rel (%p414) target = $region20
      $region19: #{_lambda_.2} parent=15 // pred_region
        %p417 = scmp.lt.s32.totalorder %s26, 1
        %s418 = scalar_select %p417, %s26, 1
        %s419 = smul.addr %s418, 8
        %s420 = scalar_lea.vmem %s0, %s419
      $region20: #{_lambda_.2} parent=15 // pred_fallthru
        _
      // Predicated region
      $region21: #{_lambda_.2} parent=15 // pred_check
        %p421 = pneg %p77
      $region22: #{_lambda_.2} parent=15 // pred_check_branch
        %423 = sbr.rel (%p421) target = $region24
      $region23: #{_lambda_.2} parent=15 // pred_region
        %p424 = scmp.lt.s32.totalorder %s27, 1
        %s425 = scalar_select %p424, %s27, 1
        %s426 = smul.addr %s425, 4
        %s427 = smul.addr %s426, 4
        %s428 = scalar_lea.vmem %s1, %s427
      $region24: #{_lambda_.2} parent=15 // pred_fallthru
        _
      // Predicated region
      $region25: #{_lambda_.2} parent=15 // pred_check
        %p429 = pneg %p103
      $region26: #{_lambda_.2} parent=15 // pred_check_branch
        %431 = sbr.rel (%p429) target = $region28
      $region27: #{_lambda_.2} parent=15 // pred_region
        %p432 = scmp.lt.s32.totalorder %s27, 1
        %s433 = scalar_select %p432, %s27, 1
        %s434 = scalar_lea.vmem %s2, %s433
      $region28: #{_lambda_.2} parent=15 // pred_fallthru
        _
      // Predicated region
      $region29: #{_lambda_.2} parent=15 // pred_check
        %p435 = pneg %p129
      $region30: #{_lambda_.2} parent=15 // pred_check_branch
        %437 = sbr.rel (%p435) target = $region32
      $region31: #{_lambda_.2} parent=15 // pred_region
        %p438 = scmp.lt.s32.totalorder %s27, 1
        %s439 = scalar_select %p438, %s27, 1
        %s440 = smul.addr %s439, 4
        %s441 = smul.addr %s440, 4
        %s442 = scalar_lea.vmem %s3, %s441
      $region32: #{_lambda_.2} parent=15 // pred_fallthru
        _
      // Predicated region
      $region33: #{_lambda_.2} parent=15 // pred_check
        %p443 = pneg %p155
      $region34: #{_lambda_.2} parent=15 // pred_check_branch
        %445 = sbr.rel (%p443) target = $region36
      $region35: #{_lambda_.2} parent=15 // pred_region
        %p446 = scmp.lt.s32.totalorder %s27, 1
        %s447 = scalar_select %p446, %s27, 1
        %s448 = scalar_lea.vmem %s4, %s447
      $region36: #{_lambda_.2} parent=15 // pred_fallthru
        _
      // Predicated region
      $region37: #{_lambda_.2} parent=15 // pred_check
        %p449 = pneg %p181
      $region38: #{_lambda_.2} parent=15 // pred_check_branch
        %451 = sbr.rel (%p449) target = $region40
      $region39: #{_lambda_.2} parent=15 // pred_region
        %p452 = scmp.lt.s32.totalorder %s27, 1
        %s453 = scalar_select %p452, %s27, 1
        %s454 = scalar_lea.vmem %s5, %s453
      $region40: #{_lambda_.2} parent=15 // pred_fallthru
        _
      // Predicated region
      $region41: #{_lambda_.2} parent=15 // pred_check
        %p455 = pneg %p207
      $region42: #{_lambda_.2} parent=15 // pred_check_branch
        %457 = sbr.rel (%p455) target = $region44
      $region43: #{_lambda_.2} parent=15 // pred_region
        %p458 = scmp.lt.s32.totalorder %s27, 1
        %s459 = scalar_select %p458, %s27, 1
        %s460 = scalar_lea.vmem %s6, %s459
      $region44: #{_lambda_.2} parent=15 // pred_fallthru
        _
      // Predicated region
      $region45: #{_lambda_.2} parent=15 // pred_check
        %p461 = pneg %p233
      $region46: #{_lambda_.2} parent=15 // pred_check_branch
        %463 = sbr.rel (%p461) target = $region48
      $region47: #{_lambda_.2} parent=15 // pred_region
        %p464 = scmp.lt.s32.totalorder %s27, 1
        %s465 = scalar_select %p464, %s27, 1
        %s466 = smul.addr %s465, 4
        %s467 = smul.addr %s466, 4
        %s468 = scalar_lea.vmem %s7, %s467
      $region48: #{_lambda_.2} parent=15 // pred_fallthru
        _
      // Predicated region
      $region49: #{_lambda_.2} parent=15 // pred_check
        %p469 = pneg %p259
      $region50: #{_lambda_.2} parent=15 // pred_check_branch
        %471 = sbr.rel (%p469) target = $region52
      $region51: #{_lambda_.2} parent=15 // pred_region
        %p472 = scmp.lt.s32.totalorder %s27, 1
        %s473 = scalar_select %p472, %s27, 1
        %s474 = scalar_lea.vmem %s8, %s473
      $region52: #{_lambda_.2} parent=15 // pred_fallthru
        _
      // Predicated region
      $region53: #{_lambda_.2} parent=15 // pred_check
        %p475 = pneg %p285
      $region54: #{_lambda_.2} parent=15 // pred_check_branch
        %477 = sbr.rel (%p475) target = $region56
      $region55: #{_lambda_.2} parent=15 // pred_region
        %p478 = scmp.lt.s32.totalorder %s27, 1
        %s479 = scalar_select %p478, %s27, 1
        %s480 = smul.addr %s479, 8
        %s481 = smul.addr %s480, 4
        %s482 = scalar_lea.vmem %s9, %s481
      $region56: #{_lambda_.2} parent=15 // pred_fallthru
        _
      // Predicated region
      $region57: #{_lambda_.2} parent=15 // pred_check
        %p483 = pneg %p311
      $region58: #{_lambda_.2} parent=15 // pred_check_branch
        %485 = sbr.rel (%p483) target = $region60
      $region59: #{_lambda_.2} parent=15 // pred_region
        %p486 = scmp.lt.s32.totalorder %s27, 1
        %s487 = scalar_select %p486, %s27, 1
        %s488 = scalar_lea.vmem %s10, %s487
      $region60: #{_lambda_.2} parent=15 // pred_fallthru
        _
      // Predicated region
      $region61: #{_lambda_.2} parent=15 // pred_check
        %p489 = pneg %p337
      $region62: #{_lambda_.2} parent=15 // pred_check_branch
        %491 = sbr.rel (%p489) target = $region64
      $region63: #{_lambda_.2} parent=15 // pred_region
        %p492 = scmp.lt.s32.totalorder %s27, 1
        %s493 = scalar_select %p492, %s27, 1
        %s494 = scalar_lea.vmem %s11, %s493
      $region64: #{_lambda_.2} parent=15 // pred_fallthru
        _
      // Predicated region
      $region65: #{_lambda_.2} parent=15 // pred_check
        %p495 = pneg %p363
      $region66: #{_lambda_.2} parent=15 // pred_check_branch
        %497 = sbr.rel (%p495) target = $region68
      $region67: #{_lambda_.2} parent=15 // pred_region
        %p498 = scmp.lt.s32.totalorder %s27, 1
        %s499 = scalar_select %p498, %s27, 1
        %s500 = scalar_lea.vmem %s12, %s499
      $region68: #{_lambda_.2} parent=15 // pred_fallthru
        _
    $region16: #{_lambda_.2} parent=5 // pred_fallthru
      _
    %p501 = scmp.le.s32.totalorder 1, %s19
    %p502 = scmp.lt.s32.totalorder %s19, 5
    %p503 = pnand %p501, %p502
    %p504 = pneg %p503
    // Predicated region
    $region69: #{_lambda_.2} parent=5 // pred_check
      _
    $region70: #{_lambda_.2} parent=5 // pred_check_branch
      %506 = sbr.rel (%p503) target = $region72
    $region71: #{_lambda_.2} parent=5 // pred_region
      %s507 = ssub.s32 %s19, 1
      %p508 = scmp.lt.s32.totalorder %s28, 1
      %s509 = scalar_select %p508, %s28, 1
      %s510 = smul.addr %s509, 8
      %s511 = scalar_lea.vmem %s0, %s510
      %p512 = pneg %p57
      %p513 = pneg %p54
      %p514 = scmp.lt.s32.totalorder %s29, 1
      %s515 = scalar_select %p514, %s29, 1
      %s516 = smul.addr %s515, 4
      %s517 = smul.addr %s516, 4
      %s518 = scalar_lea.vmem %s1, %s517
      %p519 = pneg %p83
      %p520 = pneg %p80
      %p521 = scmp.lt.s32.totalorder %s29, 1
      %s522 = scalar_select %p521, %s29, 1
      %s523 = scalar_lea.vmem %s2, %s522
      %p524 = pneg %p109
      %p525 = pneg %p106
      %p526 = scmp.lt.s32.totalorder %s29, 1
      %s527 = scalar_select %p526, %s29, 1
      %s528 = smul.addr %s527, 4
      %s529 = smul.addr %s528, 4
      %s530 = scalar_lea.vmem %s3, %s529
      %p531 = pneg %p135
      %p532 = pneg %p132
      %p533 = scmp.lt.s32.totalorder %s29, 1
      %s534 = scalar_select %p533, %s29, 1
      %s535 = scalar_lea.vmem %s4, %s534
      %p536 = pneg %p161
      %p537 = pneg %p158
      %p538 = scmp.lt.s32.totalorder %s29, 1
      %s539 = scalar_select %p538, %s29, 1
      %s540 = scalar_lea.vmem %s5, %s539
      %p541 = pneg %p187
      %p542 = pneg %p184
      %p543 = scmp.lt.s32.totalorder %s29, 1
      %s544 = scalar_select %p543, %s29, 1
      %s545 = scalar_lea.vmem %s6, %s544
      %p546 = pneg %p213
      %p547 = pneg %p210
      %p548 = scmp.lt.s32.totalorder %s29, 1
      %s549 = scalar_select %p548, %s29, 1
      %s550 = smul.addr %s549, 4
      %s551 = smul.addr %s550, 4
      %s552 = scalar_lea.vmem %s7, %s551
      %p553 = pneg %p239
      %p554 = pneg %p236
      %p555 = scmp.lt.s32.totalorder %s29, 1
      %s556 = scalar_select %p555, %s29, 1
      %s557 = scalar_lea.vmem %s8, %s556
      %p558 = pneg %p265
      %p559 = pneg %p262
      %p560 = scmp.lt.s32.totalorder %s29, 1
      %s561 = scalar_select %p560, %s29, 1
      %s562 = smul.addr %s561, 8
      %s563 = smul.addr %s562, 4
      %s564 = scalar_lea.vmem %s9, %s563
      %p565 = pneg %p291
      %p566 = pneg %p288
      %p567 = scmp.lt.s32.totalorder %s29, 1
      %s568 = scalar_select %p567, %s29, 1
      %s569 = scalar_lea.vmem %s10, %s568
      %p570 = pneg %p317
      %p571 = pneg %p314
      %p572 = scmp.lt.s32.totalorder %s29, 1
      %s573 = scalar_select %p572, %s29, 1
      %s574 = scalar_lea.vmem %s11, %s573
      %p575 = pneg %p343
      %p576 = pneg %p340
      %p577 = scmp.lt.s32.totalorder %s29, 1
      %s578 = scalar_select %p577, %s29, 1
      %s579 = scalar_lea.vmem %s12, %s578
      %p580 = pneg %p369
      %p581 = pneg %p366
      %p582 = pneg %p395
      %p583 = pneg %p392
      %p584 = scmp.lt.s32.totalorder %s28, 1
      %s585 = scalar_select %p584, %s28, 1
      %s586 = smul.addr %s585, 8
      %s587 = scalar_lea.vmem %s13, %s586
      %p588 = scmp.lt.s32.totalorder %s28, 1
      %s589 = scalar_select %p588, %s28, 1
      %s590 = smul.addr %s589, 8
      %s591 = scalar_lea.vmem %s0, %s590
      %p592 = scmp.lt.s32.totalorder %s29, 1
      %s593 = scalar_select %p592, %s29, 1
      %s594 = smul.addr %s593, 4
      %s595 = smul.addr %s594, 4
      %s596 = scalar_lea.vmem %s1, %s595
      %p597 = scmp.lt.s32.totalorder %s29, 1
      %s598 = scalar_select %p597, %s29, 1
      %s599 = scalar_lea.vmem %s2, %s598
      %p600 = scmp.lt.s32.totalorder %s29, 1
      %s601 = scalar_select %p600, %s29, 1
      %s602 = smul.addr %s601, 4
      %s603 = smul.addr %s602, 4
      %s604 = scalar_lea.vmem %s3, %s603
      %p605 = scmp.lt.s32.totalorder %s29, 1
      %s606 = scalar_select %p605, %s29, 1
      %s607 = scalar_lea.vmem %s4, %s606
      %p608 = scmp.lt.s32.totalorder %s29, 1
      %s609 = scalar_select %p608, %s29, 1
      %s610 = scalar_lea.vmem %s5, %s609
      %p611 = scmp.lt.s32.totalorder %s29, 1
      %s612 = scalar_select %p611, %s29, 1
      %s613 = scalar_lea.vmem %s6, %s612
      %p614 = scmp.lt.s32.totalorder %s29, 1
      %s615 = scalar_select %p614, %s29, 1
      %s616 = smul.addr %s615, 4
      %s617 = smul.addr %s616, 4
      %s618 = scalar_lea.vmem %s7, %s617
      %p619 = scmp.lt.s32.totalorder %s29, 1
      %s620 = scalar_select %p619, %s29, 1
      %s621 = scalar_lea.vmem %s8, %s620
      %p622 = scmp.lt.s32.totalorder %s29, 1
      %s623 = scalar_select %p622, %s29, 1
      %s624 = smul.addr %s623, 8
      %s625 = smul.addr %s624, 4
      %s626 = scalar_lea.vmem %s9, %s625
      %p627 = scmp.lt.s32.totalorder %s29, 1
      %s628 = scalar_select %p627, %s29, 1
      %s629 = scalar_lea.vmem %s10, %s628
      %p630 = scmp.lt.s32.totalorder %s29, 1
      %s631 = scalar_select %p630, %s29, 1
      %s632 = scalar_lea.vmem %s11, %s631
      %p633 = scmp.lt.s32.totalorder %s29, 1
      %s634 = scalar_select %p633, %s29, 1
      %s635 = scalar_lea.vmem %s12, %s634
      %p636 = scmp.lt.s32.totalorder %s28, 1
      %s637 = scalar_select %p636, %s28, 1
      %s638 = smul.addr %s637, 8
      %s639 = scalar_lea.vmem %s13, %s638
      %p641 = scmp.eq.s32.totalorder %s29, 0
      // Predicated region
      $region73: #{_lambda_.2} parent=71 // pred_check
        %p642 = pneg %p641
      $region74: #{_lambda_.2} parent=71 // pred_check_branch
        %644 = sbr.rel (%p642) target = $region76
      $region75: #{_lambda_.2} parent=71 // pred_region
        %v645 = vld [vmem:[%s591] sm:$0xff]
        %vm646 = vcmask 261120
        %647 = vst.msk [vmem:[%s639] sm:$0xff] %vm646, %v645
      $region76: #{_lambda_.2} parent=71 // pred_fallthru
        _
      %v648 = vld [vmem:[%s639] sm:$0xff]
      %v649 = vpack.c.bf16 %v648, %v648
      %v650 = vld [vmem:[%s596] sm:$0xf]
      %v651 = vld [vmem:[%s596 + $0x4] sm:$0xf]
      %v652 = vld [vmem:[%s596 + $0x8] sm:$0xf]
      %v653 = vld [vmem:[%s596 + $0xc] sm:$0xf]
      %v654 = vld [vmem:[%s599] sm:$0x1]
      %v656 = vlaneseq
      %v657 = vshrl.u32 %v656, 7
      %v658 = vsub.s32 0, %v657
      %v659 = vrot.slane %v654, %v658
      %v665 = vunpack.c.l.b16 %v650
      %v666 = vunpack.c.l.b16 %v651
      %v667 = vunpack.c.l.b16 %v652
      %v668 = vunpack.c.l.b16 %v653
      %v669 = vpack.c.b16 %v666, %v665
      %v670 = vpack.c.b16 %v668, %v667
      %vm673 = vcmask 261120
      %v675 = vsel %vm673, %v649, 0
      %677 = vmatprep.subr.bf16.mxu0 0
      %678 = vmatpush1.bf16.msra.mxu0 %v669
      %679 = vmatprep.subr.bf16.mxu0 0
      %680 = vmatpush1.bf16.msra.mxu0 %v670
      %681 = vmatprep.subr.bf16.mxu0 0
      %682 = vmatpush1.bf16.msra.mxu0 0
      %683 = vmatprep.subr.bf16.mxu0 0
      %684 = vmatpush1.bf16.msra.mxu0 0
      %685 = vmatprep.subr.bf16.mxu0 0
      %686 = vmatpush1.bf16.msra.mxu0 0
      %687 = vmatprep.subr.bf16.mxu0 0
      %688 = vmatpush1.bf16.msra.mxu0 0
      %689 = vmatprep.subr.bf16.mxu0 0
      %690 = vmatpush1.bf16.msra.mxu0 0
      %691 = vmatprep.subr.bf16.mxu0 0
      %692 = vmatpush1.bf16.msra.mxu0 0
      %693 = vmatprep.subr.bf16.mxu0 0
      %694 = vmatpush1.bf16.msra.mxu0 0
      %695 = vmatprep.subr.bf16.mxu0 0
      %696 = vmatpush1.bf16.msra.mxu0 0
      %697 = vmatprep.subr.bf16.mxu0 0
      %698 = vmatpush1.bf16.msra.mxu0 0
      %699 = vmatprep.subr.bf16.mxu0 0
      %700 = vmatpush1.bf16.msra.mxu0 0
      %701 = vmatprep.subr.bf16.mxu0 0
      %702 = vmatpush1.bf16.msra.mxu0 0
      %703 = vmatprep.subr.bf16.mxu0 0
      %704 = vmatpush1.bf16.msra.mxu0 0
      %705 = vmatprep.subr.bf16.mxu0 0
      %706 = vmatpush1.bf16.msra.mxu0 0
      %707 = vmatprep.subr.bf16.mxu0 0
      %708 = vmatpush1.bf16.msra.mxu0 0
      %709 = vmatprep.mubr.bf16.mxu0 0
      %710 = vmatmul.mubr.bf16.gmra.mrb[0].mxu0 %v675
      %v711 = vpop.f32.mrb[0].mxu0
      %v712 = vadd.f32 %v659, %v711
      %v713 = vpop.f32.mrb[0].mxu0
      %v714 = vpop.f32.mrb[0].mxu0
      %v715 = vpop.f32.mrb[0].mxu0
      %716 = vdwg.mxu0
      %v717 = vpack.c.bf16 %v712, %v712
      %719 = vrot.lane.b32.xlu0 %v717, 96
      %v720 = vpop.permute.xlu0 %719
      %vm721 = vcmask 64512
      %v723 = vsel %vm721, %v717, 0
      %v726 = vsel %vm721, %v720, 0
      %728 = vmatprep.subr.bf16.mxu0 0
      %729 = vmatpush1.bf16.xpose.msra.mxu0 %v726
      %730 = vmatprep.subr.bf16.mxu0 0
      %731 = vmatpush1.bf16.xpose.msra.mxu0 0
      %732 = vmatprep.subr.bf16.mxu0 0
      %733 = vmatpush1.bf16.xpose.msra.mxu0 0
      %734 = vmatprep.subr.bf16.mxu0 0
      %735 = vmatpush1.bf16.xpose.msra.mxu0 0
      %736 = vmatprep.subr.bf16.mxu0 0
      %737 = vmatpush1.bf16.xpose.msra.mxu0 0
      %738 = vmatprep.subr.bf16.mxu0 0
      %739 = vmatpush1.bf16.xpose.msra.mxu0 0
      %740 = vmatprep.subr.bf16.mxu0 0
      %741 = vmatpush1.bf16.xpose.msra.mxu0 0
      %742 = vmatprep.subr.bf16.mxu0 0
      %743 = vmatpush1.bf16.xpose.msra.mxu0 0
      %744 = vmatprep.subr.bf16.mxu0 0
      %745 = vmatpush1.bf16.xpose.msra.mxu0 0
      %746 = vmatprep.subr.bf16.mxu0 0
      %747 = vmatpush1.bf16.xpose.msra.mxu0 0
      %748 = vmatprep.subr.bf16.mxu0 0
      %749 = vmatpush1.bf16.xpose.msra.mxu0 0
      %750 = vmatprep.subr.bf16.mxu0 0
      %751 = vmatpush1.bf16.xpose.msra.mxu0 0
      %752 = vmatprep.subr.bf16.mxu0 0
      %753 = vmatpush1.bf16.xpose.msra.mxu0 0
      %754 = vmatprep.subr.bf16.mxu0 0
      %755 = vmatpush1.bf16.xpose.msra.mxu0 0
      %756 = vmatprep.subr.bf16.mxu0 0
      %757 = vmatpush1.bf16.xpose.msra.mxu0 0
      %758 = vmatprep.subr.bf16.mxu0 0
      %759 = vmatpush1.bf16.xpose.msra.mxu0 0
      %760 = vmatprep.mubr.bf16.mxu0 0
      %761 = vmatmul.mubr.bf16.gmra.mrb[0].mxu0 %v723
      %v762 = vpop.f32.mrb[0].mxu0
      %v763 = vadd.f32 0.0, %v762
      %v764 = vpop.f32.mrb[0].mxu0
      %v765 = vpop.f32.mrb[0].mxu0
      %v766 = vpop.f32.mrb[0].mxu0
      %767 = vdwg.mxu0
      %v768 = vmul.f32 %v763, 0.35355338
      %v769 = vsel %vm721, %v768, -inf
      %770 = vmax.xlane.f32.xlu0 %v769
      %v771 = vpop.xlane.xlu0 %770
      %v772 = vsub.f32 %v768, %v771
      %v773 = vmul.f32 %v772, 1.442695
      %v774 = vpow.pop %v773
      %v775 = vsel %vm721, %v774, 0.0
      %776 = vadd.xlane.f32.xlu0 %v775
      %v777 = vpop.xlane.xlu0 %776
      %v778 = vrcp.pop %v777
      %v779 = vmul.f32 %v774, %v778
      %v780 = vpack.c.bf16 %v779, %v779
      %781 = vrot.lane.b32.xlu0 %v717, 64
      %v782 = vpop.permute.xlu0 %781
      %v784 = vsel %vm721, %v780, 0
      %vm786 = vcmask 1043456
      %v788 = vsel %vm786, %v782, 0
      %790 = vmatprep.subr.bf16.mxu0 0
      %791 = vmatpush1.bf16.msra.mxu0 %v788
      %792 = vmatprep.subr.bf16.mxu0 0
      %793 = vmatpush1.bf16.msra.mxu0 0
      %794 = vmatprep.subr.bf16.mxu0 0
      %795 = vmatpush1.bf16.msra.mxu0 0
      %796 = vmatprep.subr.bf16.mxu0 0
      %797 = vmatpush1.bf16.msra.mxu0 0
      %798 = vmatprep.subr.bf16.mxu0 0
      %799 = vmatpush1.bf16.msra.mxu0 0
      %800 = vmatprep.subr.bf16.mxu0 0
      %801 = vmatpush1.bf16.msra.mxu0 0
      %802 = vmatprep.subr.bf16.mxu0 0
      %803 = vmatpush1.bf16.msra.mxu0 0
      %804 = vmatprep.subr.bf16.mxu0 0
      %805 = vmatpush1.bf16.msra.mxu0 0
      %806 = vmatprep.subr.bf16.mxu0 0
      %807 = vmatpush1.bf16.msra.mxu0 0
      %808 = vmatprep.subr.bf16.mxu0 0
      %809 = vmatpush1.bf16.msra.mxu0 0
      %810 = vmatprep.subr.bf16.mxu0 0
      %811 = vmatpush1.bf16.msra.mxu0 0
      %812 = vmatprep.subr.bf16.mxu0 0
      %813 = vmatpush1.bf16.msra.mxu0 0
      %814 = vmatprep.subr.bf16.mxu0 0
      %815 = vmatpush1.bf16.msra.mxu0 0
      %816 = vmatprep.subr.bf16.mxu0 0
      %817 = vmatpush1.bf16.msra.mxu0 0
      %818 = vmatprep.subr.bf16.mxu0 0
      %819 = vmatpush1.bf16.msra.mxu0 0
      %820 = vmatprep.subr.bf16.mxu0 0
      %821 = vmatpush1.bf16.msra.mxu0 0
      %822 = vmatprep.mubr.bf16.mxu0 0
      %823 = vmatmul.mubr.bf16.gmra.mrb[0].mxu0 %v784
      %v824 = vpop.f32.mrb[0].mxu0
      %v825 = vadd.f32 0.0, %v824
      %v826 = vpop.f32.mrb[0].mxu0
      %v827 = vpop.f32.mrb[0].mxu0
      %v828 = vpop.f32.mrb[0].mxu0
      %829 = vdwg.mxu0
      %830 = vrot.lane.b32.xlu0 %v717, 120
      %v831 = vpop.permute.xlu0 %830
      %832 = vrot.lane.b32.xlu0 %v717, 88
      %v833 = vpop.permute.xlu0 %832
      %v835 = vsel %vm721, %v831, 0
      %v838 = vsel %vm721, %v833, 0
      %840 = vmatprep.subr.bf16.mxu0 0
      %841 = vmatpush1.bf16.xpose.msra.mxu0 %v838
      %842 = vmatprep.subr.bf16.mxu0 0
      %843 = vmatpush1.bf16.xpose.msra.mxu0 0
      %844 = vmatprep.subr.bf16.mxu0 0
      %845 = vmatpush1.bf16.xpose.msra.mxu0 0
      %846 = vmatprep.subr.bf16.mxu0 0
      %847 = vmatpush1.bf16.xpose.msra.mxu0 0
      %848 = vmatprep.subr.bf16.mxu0 0
      %849 = vmatpush1.bf16.xpose.msra.mxu0 0
      %850 = vmatprep.subr.bf16.mxu0 0
      %851 = vmatpush1.bf16.xpose.msra.mxu0 0
      %852 = vmatprep.subr.bf16.mxu0 0
      %853 = vmatpush1.bf16.xpose.msra.mxu0 0
      %854 = vmatprep.subr.bf16.mxu0 0
      %855 = vmatpush1.bf16.xpose.msra.mxu0 0
      %856 = vmatprep.subr.bf16.mxu0 0
      %857 = vmatpush1.bf16.xpose.msra.mxu0 0
      %858 = vmatprep.subr.bf16.mxu0 0
      %859 = vmatpush1.bf16.xpose.msra.mxu0 0
      %860 = vmatprep.subr.bf16.mxu0 0
      %861 = vmatpush1.bf16.xpose.msra.mxu0 0
      %862 = vmatprep.subr.bf16.mxu0 0
      %863 = vmatpush1.bf16.xpose.msra.mxu0 0
      %864 = vmatprep.subr.bf16.mxu0 0
      %865 = vmatpush1.bf16.xpose.msra.mxu0 0
      %866 = vmatprep.subr.bf16.mxu0 0
      %867 = vmatpush1.bf16.xpose.msra.mxu0 0
      %868 = vmatprep.subr.bf16.mxu0 0
      %869 = vmatpush1.bf16.xpose.msra.mxu0 0
      %870 = vmatprep.subr.bf16.mxu0 0
      %871 = vmatpush1.bf16.xpose.msra.mxu0 0
      %872 = vmatprep.mubr.bf16.mxu0 0
      %873 = vmatmul.mubr.bf16.gmra.mrb[0].mxu0 %v835
      %v874 = vpop.f32.mrb[0].mxu0
      %v875 = vadd.f32 0.0, %v874
      %v876 = vpop.f32.mrb[0].mxu0
      %v877 = vpop.f32.mrb[0].mxu0
      %v878 = vpop.f32.mrb[0].mxu0
      %879 = vdwg.mxu0
      %v880 = vmul.f32 %v875, 0.35355338
      %v881 = vsel %vm721, %v880, -inf
      %882 = vmax.xlane.f32.xlu0 %v881
      %v883 = vpop.xlane.xlu0 %882
      %v884 = vsub.f32 %v880, %v883
      %v885 = vmul.f32 %v884, 1.442695
      %v886 = vpow.pop %v885
      %v887 = vsel %vm721, %v886, 0.0
      %888 = vadd.xlane.f32.xlu0 %v887
      %v889 = vpop.xlane.xlu0 %888
      %v890 = vrcp.pop %v889
      %v891 = vmul.f32 %v886, %v890
      %v892 = vpack.c.bf16 %v891, %v891
      %893 = vrot.lane.b32.xlu0 %v717, 56
      %v894 = vpop.permute.xlu0 %893
      %v896 = vsel %vm721, %v892, 0
      %v899 = vsel %vm786, %v894, 0
      %901 = vmatprep.subr.bf16.mxu0 0
      %902 = vmatpush1.bf16.msra.mxu0 %v899
      %903 = vmatprep.subr.bf16.mxu0 0
      %904 = vmatpush1.bf16.msra.mxu0 0
      %905 = vmatprep.subr.bf16.mxu0 0
      %906 = vmatpush1.bf16.msra.mxu0 0
      %907 = vmatprep.subr.bf16.mxu0 0
      %908 = vmatpush1.bf16.msra.mxu0 0
      %909 = vmatprep.subr.bf16.mxu0 0
      %910 = vmatpush1.bf16.msra.mxu0 0
      %911 = vmatprep.subr.bf16.mxu0 0
      %912 = vmatpush1.bf16.msra.mxu0 0
      %913 = vmatprep.subr.bf16.mxu0 0
      %914 = vmatpush1.bf16.msra.mxu0 0
      %915 = vmatprep.subr.bf16.mxu0 0
      %916 = vmatpush1.bf16.msra.mxu0 0
      %917 = vmatprep.subr.bf16.mxu0 0
      %918 = vmatpush1.bf16.msra.mxu0 0
      %919 = vmatprep.subr.bf16.mxu0 0
      %920 = vmatpush1.bf16.msra.mxu0 0
      %921 = vmatprep.subr.bf16.mxu0 0
      %922 = vmatpush1.bf16.msra.mxu0 0
      %923 = vmatprep.subr.bf16.mxu0 0
      %924 = vmatpush1.bf16.msra.mxu0 0
      %925 = vmatprep.subr.bf16.mxu0 0
      %926 = vmatpush1.bf16.msra.mxu0 0
      %927 = vmatprep.subr.bf16.mxu0 0
      %928 = vmatpush1.bf16.msra.mxu0 0
      %929 = vmatprep.subr.bf16.mxu0 0
      %930 = vmatpush1.bf16.msra.mxu0 0
      %931 = vmatprep.subr.bf16.mxu0 0
      %932 = vmatpush1.bf16.msra.mxu0 0
      %933 = vmatprep.mubr.bf16.mxu0 0
      %934 = vmatmul.mubr.bf16.gmra.mrb[0].mxu0 %v896
      %v935 = vpop.f32.mrb[0].mxu0
      %v936 = vadd.f32 0.0, %v935
      %v937 = vpop.f32.mrb[0].mxu0
      %v938 = vpop.f32.mrb[0].mxu0
      %v939 = vpop.f32.mrb[0].mxu0
      %940 = vdwg.mxu0
      %941 = vrot.lane.b32.xlu0 %v717, 112
      %v942 = vpop.permute.xlu0 %941
      %943 = vrot.lane.b32.xlu0 %v717, 80
      %v944 = vpop.permute.xlu0 %943
      %v946 = vsel %vm721, %v942, 0
      %v949 = vsel %vm721, %v944, 0
      %951 = vmatprep.subr.bf16.mxu0 0
      %952 = vmatpush1.bf16.xpose.msra.mxu0 %v949
      %953 = vmatprep.subr.bf16.mxu0 0
      %954 = vmatpush1.bf16.xpose.msra.mxu0 0
      %955 = vmatprep.subr.bf16.mxu0 0
      %956 = vmatpush1.bf16.xpose.msra.mxu0 0
      %957 = vmatprep.subr.bf16.mxu0 0
      %958 = vmatpush1.bf16.xpose.msra.mxu0 0
      %959 = vmatprep.subr.bf16.mxu0 0
      %960 = vmatpush1.bf16.xpose.msra.mxu0 0
      %961 = vmatprep.subr.bf16.mxu0 0
      %962 = vmatpush1.bf16.xpose.msra.mxu0 0
      %963 = vmatprep.subr.bf16.mxu0 0
      %964 = vmatpush1.bf16.xpose.msra.mxu0 0
      %965 = vmatprep.subr.bf16.mxu0 0
      %966 = vmatpush1.bf16.xpose.msra.mxu0 0
      %967 = vmatprep.subr.bf16.mxu0 0
      %968 = vmatpush1.bf16.xpose.msra.mxu0 0
      %969 = vmatprep.subr.bf16.mxu0 0
      %970 = vmatpush1.bf16.xpose.msra.mxu0 0
      %971 = vmatprep.subr.bf16.mxu0 0
      %972 = vmatpush1.bf16.xpose.msra.mxu0 0
      %973 = vmatprep.subr.bf16.mxu0 0
      %974 = vmatpush1.bf16.xpose.msra.mxu0 0
      %975 = vmatprep.subr.bf16.mxu0 0
      %976 = vmatpush1.bf16.xpose.msra.mxu0 0
      %977 = vmatprep.subr.bf16.mxu0 0
      %978 = vmatpush1.bf16.xpose.msra.mxu0 0
      %979 = vmatprep.subr.bf16.mxu0 0
      %980 = vmatpush1.bf16.xpose.msra.mxu0 0
      %981 = vmatprep.subr.bf16.mxu0 0
      %982 = vmatpush1.bf16.xpose.msra.mxu0 0
      %983 = vmatprep.mubr.bf16.mxu0 0
      %984 = vmatmul.mubr.bf16.gmra.mrb[0].mxu0 %v946
      %v985 = vpop.f32.mrb[0].mxu0
      %v986 = vadd.f32 0.0, %v985
      %v987 = vpop.f32.mrb[0].mxu0
      %v988 = vpop.f32.mrb[0].mxu0
      %v989 = vpop.f32.mrb[0].mxu0
      %990 = vdwg.mxu0
      %v991 = vmul.f32 %v986, 0.35355338
      %v992 = vsel %vm721, %v991, -inf
      %993 = vmax.xlane.f32.xlu0 %v992
      %v994 = vpop.xlane.xlu0 %993
      %v995 = vsub.f32 %v991, %v994
      %v996 = vmul.f32 %v995, 1.442695
      %v997 = vpow.pop %v996
      %v998 = vsel %vm721, %v997, 0.0
      %999 = vadd.xlane.f32.xlu0 %v998
      %v1000 = vpop.xlane.xlu0 %999
      %v1001 = vrcp.pop %v1000
      %v1002 = vmul.f32 %v997, %v1001
      %v1003 = vpack.c.bf16 %v1002, %v1002
      %1004 = vrot.lane.b32.xlu0 %v717, 48
      %v1005 = vpop.permute.xlu0 %1004
      %v1007 = vsel %vm721, %v1003, 0
      %v1010 = vsel %vm786, %v1005, 0
      %1012 = vmatprep.subr.bf16.mxu0 0
      %1013 = vmatpush1.bf16.msra.mxu0 %v1010
      %1014 = vmatprep.subr.bf16.mxu0 0
      %1015 = vmatpush1.bf16.msra.mxu0 0
      %1016 = vmatprep.subr.bf16.mxu0 0
      %1017 = vmatpush1.bf16.msra.mxu0 0
      %1018 = vmatprep.subr.bf16.mxu0 0
      %1019 = vmatpush1.bf16.msra.mxu0 0
      %1020 = vmatprep.subr.bf16.mxu0 0
      %1021 = vmatpush1.bf16.msra.mxu0 0
      %1022 = vmatprep.subr.bf16.mxu0 0
      %1023 = vmatpush1.bf16.msra.mxu0 0
      %1024 = vmatprep.subr.bf16.mxu0 0
      %1025 = vmatpush1.bf16.msra.mxu0 0
      %1026 = vmatprep.subr.bf16.mxu0 0
      %1027 = vmatpush1.bf16.msra.mxu0 0
      %1028 = vmatprep.subr.bf16.mxu0 0
      %1029 = vmatpush1.bf16.msra.mxu0 0
      %1030 = vmatprep.subr.bf16.mxu0 0
      %1031 = vmatpush1.bf16.msra.mxu0 0
      %1032 = vmatprep.subr.bf16.mxu0 0
      %1033 = vmatpush1.bf16.msra.mxu0 0
      %1034 = vmatprep.subr.bf16.mxu0 0
      %1035 = vmatpush1.bf16.msra.mxu0 0
      %1036 = vmatprep.subr.bf16.mxu0 0
      %1037 = vmatpush1.bf16.msra.mxu0 0
      %1038 = vmatprep.subr.bf16.mxu0 0
      %1039 = vmatpush1.bf16.msra.mxu0 0
      %1040 = vmatprep.subr.bf16.mxu0 0
      %1041 = vmatpush1.bf16.msra.mxu0 0
      %1042 = vmatprep.subr.bf16.mxu0 0
      %1043 = vmatpush1.bf16.msra.mxu0 0
      %1044 = vmatprep.mubr.bf16.mxu0 0
      %1045 = vmatmul.mubr.bf16.gmra.mrb[0].mxu0 %v1007
      %v1046 = vpop.f32.mrb[0].mxu0
      %v1047 = vadd.f32 0.0, %v1046
      %v1048 = vpop.f32.mrb[0].mxu0
      %v1049 = vpop.f32.mrb[0].mxu0
      %v1050 = vpop.f32.mrb[0].mxu0
      %1051 = vdwg.mxu0
      %1052 = vrot.lane.b32.xlu0 %v717, 104
      %v1053 = vpop.permute.xlu0 %1052
      %1054 = vrot.lane.b32.xlu0 %v717, 72
      %v1055 = vpop.permute.xlu0 %1054
      %v1057 = vsel %vm721, %v1053, 0
      %v1060 = vsel %vm721, %v1055, 0
      %1062 = vmatprep.subr.bf16.mxu0 0
      %1063 = vmatpush1.bf16.xpose.msra.mxu0 %v1060
      %1064 = vmatprep.subr.bf16.mxu0 0
      %1065 = vmatpush1.bf16.xpose.msra.mxu0 0
      %1066 = vmatprep.subr.bf16.mxu0 0
      %1067 = vmatpush1.bf16.xpose.msra.mxu0 0
      %1068 = vmatprep.subr.bf16.mxu0 0
      %1069 = vmatpush1.bf16.xpose.msra.mxu0 0
      %1070 = vmatprep.subr.bf16.mxu0 0
      %1071 = vmatpush1.bf16.xpose.msra.mxu0 0
      %1072 = vmatprep.subr.bf16.mxu0 0
      %1073 = vmatpush1.bf16.xpose.msra.mxu0 0
      %1074 = vmatprep.subr.bf16.mxu0 0
      %1075 = vmatpush1.bf16.xpose.msra.mxu0 0
      %1076 = vmatprep.subr.bf16.mxu0 0
      %1077 = vmatpush1.bf16.xpose.msra.mxu0 0
      %1078 = vmatprep.subr.bf16.mxu0 0
      %1079 = vmatpush1.bf16.xpose.msra.mxu0 0
      %1080 = vmatprep.subr.bf16.mxu0 0
      %1081 = vmatpush1.bf16.xpose.msra.mxu0 0
      %1082 = vmatprep.subr.bf16.mxu0 0
      %1083 = vmatpush1.bf16.xpose.msra.mxu0 0
      %1084 = vmatprep.subr.bf16.mxu0 0
      %1085 = vmatpush1.bf16.xpose.msra.mxu0 0
      %1086 = vmatprep.subr.bf16.mxu0 0
      %1087 = vmatpush1.bf16.xpose.msra.mxu0 0
      %1088 = vmatprep.subr.bf16.mxu0 0
      %1089 = vmatpush1.bf16.xpose.msra.mxu0 0
      %1090 = vmatprep.subr.bf16.mxu0 0
      %1091 = vmatpush1.bf16.xpose.msra.mxu0 0
      %1092 = vmatprep.subr.bf16.mxu0 0
      %1093 = vmatpush1.bf16.xpose.msra.mxu0 0
      %1094 = vmatprep.mubr.bf16.mxu0 0
      %1095 = vmatmul.mubr.bf16.gmra.mrb[0].mxu0 %v1057
      %v1096 = vpop.f32.mrb[0].mxu0
      %v1097 = vadd.f32 0.0, %v1096
      %v1098 = vpop.f32.mrb[0].mxu0
      %v1099 = vpop.f32.mrb[0].mxu0
      %v1100 = vpop.f32.mrb[0].mxu0
      %1101 = vdwg.mxu0
      %v1102 = vmul.f32 %v1097, 0.35355338
      %v1103 = vsel %vm721, %v1102, -inf
      %1104 = vmax.xlane.f32.xlu0 %v1103
      %v1105 = vpop.xlane.xlu0 %1104
      %v1106 = vsub.f32 %v1102, %v1105
      %v1107 = vmul.f32 %v1106, 1.442695
      %v1108 = vpow.pop %v1107
      %v1109 = vsel %vm721, %v1108, 0.0
      %1110 = vadd.xlane.f32.xlu0 %v1109
      %v1111 = vpop.xlane.xlu0 %1110
      %v1112 = vrcp.pop %v1111
      %v1113 = vmul.f32 %v1108, %v1112
      %v1114 = vpack.c.bf16 %v1113, %v1113
      %1115 = vrot.lane.b32.xlu0 %v717, 40
      %v1116 = vpop.permute.xlu0 %1115
      %v1118 = vsel %vm721, %v1114, 0
      %v1121 = vsel %vm786, %v1116, 0
      %1123 = vmatprep.subr.bf16.mxu0 0
      %1124 = vmatpush1.bf16.msra.mxu0 %v1121
      %1125 = vmatprep.subr.bf16.mxu0 0
      %1126 = vmatpush1.bf16.msra.mxu0 0
      %1127 = vmatprep.subr.bf16.mxu0 0
      %1128 = vmatpush1.bf16.msra.mxu0 0
      %1129 = vmatprep.subr.bf16.mxu0 0
      %1130 = vmatpush1.bf16.msra.mxu0 0
      %1131 = vmatprep.subr.bf16.mxu0 0
      %1132 = vmatpush1.bf16.msra.mxu0 0
      %1133 = vmatprep.subr.bf16.mxu0 0
      %1134 = vmatpush1.bf16.msra.mxu0 0
      %1135 = vmatprep.subr.bf16.mxu0 0
      %1136 = vmatpush1.bf16.msra.mxu0 0
      %1137 = vmatprep.subr.bf16.mxu0 0
      %1138 = vmatpush1.bf16.msra.mxu0 0
      %1139 = vmatprep.subr.bf16.mxu0 0
      %1140 = vmatpush1.bf16.msra.mxu0 0
      %1141 = vmatprep.subr.bf16.mxu0 0
      %1142 = vmatpush1.bf16.msra.mxu0 0
      %1143 = vmatprep.subr.bf16.mxu0 0
      %1144 = vmatpush1.bf16.msra.mxu0 0
      %1145 = vmatprep.subr.bf16.mxu0 0
      %1146 = vmatpush1.bf16.msra.mxu0 0
      %1147 = vmatprep.subr.bf16.mxu0 0
      %1148 = vmatpush1.bf16.msra.mxu0 0
      %1149 = vmatprep.subr.bf16.mxu0 0
      %1150 = vmatpush1.bf16.msra.mxu0 0
      %1151 = vmatprep.subr.bf16.mxu0 0
      %1152 = vmatpush1.bf16.msra.mxu0 0
      %1153 = vmatprep.subr.bf16.mxu0 0
      %1154 = vmatpush1.bf16.msra.mxu0 0
      %1155 = vmatprep.mubr.bf16.mxu0 0
      %1156 = vmatmul.mubr.bf16.gmra.mrb[0].mxu0 %v1118
      %v1157 = vpop.f32.mrb[0].mxu0
      %v1158 = vadd.f32 0.0, %v1157
      %v1159 = vpop.f32.mrb[0].mxu0
      %v1160 = vpop.f32.mrb[0].mxu0
      %v1161 = vpop.f32.mrb[0].mxu0
      %1162 = vdwg.mxu0
      %1164 = vrot.lane.b32.xlu0 %v936, 8
      %v1165 = vpop.permute.xlu0 %1164
      %1168 = vrot.lane.b32.xlu0 %v1047, 16
      %v1169 = vpop.permute.xlu0 %1168
      %1172 = vrot.lane.b32.xlu0 %v1158, 24
      %v1173 = vpop.permute.xlu0 %1172
      %v1175 = vsel %vm721, %v825, %v1165
      %vm1176 = vcmask 130048
      %v1177 = vsel %vm1176, %v1175, %v1169
      %vm1178 = vcmask 195584
      %v1179 = vsel %vm1178, %v1177, %v1173
      %v1180 = vpack.c.bf16 %v1179, %v1179
      %v1181 = vld [vmem:[%s604] sm:$0xf]
      %v1182 = vld [vmem:[%s604 + $0x4] sm:$0xf]
      %v1183 = vld [vmem:[%s604 + $0x8] sm:$0xf]
      %v1184 = vld [vmem:[%s604 + $0xc] sm:$0xf]
      %v1185 = vld [vmem:[%s607] sm:$0x1]
      %v1187 = vlaneseq
      %v1188 = vshrl.u32 %v1187, 7
      %v1189 = vsub.s32 0, %v1188
      %v1190 = vrot.slane %v1185, %v1189
      %v1196 = vunpack.c.l.b16 %v1181
      %v1197 = vunpack.c.l.b16 %v1182
      %v1198 = vunpack.c.l.b16 %v1183
      %v1199 = vunpack.c.l.b16 %v1184
      %v1200 = vpack.c.b16 %v1197, %v1196
      %v1201 = vpack.c.b16 %v1199, %v1198
      %v1205 = vsel %vm673, %v1180, 0
      %1207 = vmatprep.subr.bf16.mxu0 0
      %1208 = vmatpush1.bf16.msra.mxu0 %v1200
      %1209 = vmatprep.subr.bf16.mxu0 0
      %1210 = vmatpush1.bf16.msra.mxu0 %v1201
      %1211 = vmatprep.subr.bf16.mxu0 0
      %1212 = vmatpush1.bf16.msra.mxu0 0
      %1213 = vmatprep.subr.bf16.mxu0 0
      %1214 = vmatpush1.bf16.msra.mxu0 0
      %1215 = vmatprep.subr.bf16.mxu0 0
      %1216 = vmatpush1.bf16.msra.mxu0 0
      %1217 = vmatprep.subr.bf16.mxu0 0
      %1218 = vmatpush1.bf16.msra.mxu0 0
      %1219 = vmatprep.subr.bf16.mxu0 0
      %1220 = vmatpush1.bf16.msra.mxu0 0
      %1221 = vmatprep.subr.bf16.mxu0 0
      %1222 = vmatpush1.bf16.msra.mxu0 0
      %1223 = vmatprep.subr.bf16.mxu0 0
      %1224 = vmatpush1.bf16.msra.mxu0 0
      %1225 = vmatprep.subr.bf16.mxu0 0
      %1226 = vmatpush1.bf16.msra.mxu0 0
      %1227 = vmatprep.subr.bf16.mxu0 0
      %1228 = vmatpush1.bf16.msra.mxu0 0
      %1229 = vmatprep.subr.bf16.mxu0 0
      %1230 = vmatpush1.bf16.msra.mxu0 0
      %1231 = vmatprep.subr.bf16.mxu0 0
      %1232 = vmatpush1.bf16.msra.mxu0 0
      %1233 = vmatprep.subr.bf16.mxu0 0
      %1234 = vmatpush1.bf16.msra.mxu0 0
      %1235 = vmatprep.subr.bf16.mxu0 0
      %1236 = vmatpush1.bf16.msra.mxu0 0
      %1237 = vmatprep.subr.bf16.mxu0 0
      %1238 = vmatpush1.bf16.msra.mxu0 0
      %1239 = vmatprep.mubr.bf16.mxu0 0
      %1240 = vmatmul.mubr.bf16.gmra.mrb[0].mxu0 %v1205
      %v1241 = vpop.f32.mrb[0].mxu0
      %v1242 = vadd.f32 %v1190, %v1241
      %v1243 = vpop.f32.mrb[0].mxu0
      %v1244 = vpop.f32.mrb[0].mxu0
      %v1245 = vpop.f32.mrb[0].mxu0
      %1246 = vdwg.mxu0
      %v1247 = vadd.f32 %v648, %v1242
      %v1248 = vld [vmem:[%s610] sm:$0x1]
      %v1249 = vld [vmem:[%s613] sm:$0x1]
      %v1250 = vsel %vm673, %v1247, 0.0
      %1251 = vadd.xlane.f32.xlu0 %v1250
      %v1252 = vpop.xlane.xlu0 %1251
      %v1253 = vrcp.pop 32.0
      %v1254 = vmul.f32 %v1252, %v1253
      %v1255 = vsub.f32 %v1247, %v1254
      %v1256 = vmul.f32 %v1255, %v1255
      %v1257 = vsel %vm673, %v1256, 0.0
      %1258 = vadd.xlane.f32.xlu0 %v1257
      %v1259 = vpop.xlane.xlu0 %1258
      %v1260 = vmul.f32 %v1259, %v1253
      %v1261 = vadd.f32 %v1260, 1e-05
      %v1262 = vrsqrt.pop %v1261
      %v1263 = vmul.f32 %v1255, %v1262
      %v1265 = vlaneseq
      %v1266 = vshrl.u32 %v1265, 7
      %v1267 = vsub.s32 0, %v1266
      %v1268 = vrot.slane %v1248, %v1267
      %v1270 = vmul.f32 %v1263, %v1268
      %v1272 = vlaneseq
      %v1273 = vshrl.u32 %v1272, 7
      %v1274 = vsub.s32 0, %v1273
      %v1275 = vrot.slane %v1249, %v1274
      %v1277 = vadd.f32 %v1270, %v1275
      %v1278 = vpack.c.bf16 %v1277, %v1277
      %v1279 = vld [vmem:[%s618] sm:$0xf]
      %v1280 = vld [vmem:[%s618 + $0x4] sm:$0xf]
      %v1281 = vld [vmem:[%s618 + $0x8] sm:$0xf]
      %v1282 = vld [vmem:[%s618 + $0xc] sm:$0xf]
      %v1283 = vld [vmem:[%s621] sm:$0x1]
      %v1285 = vlaneseq
      %v1286 = vshrl.u32 %v1285, 7
      %v1287 = vsub.s32 0, %v1286
      %v1288 = vrot.slane %v1283, %v1287
      %v1294 = vunpack.c.l.b16 %v1279
      %v1295 = vunpack.c.l.b16 %v1280
      %v1296 = vunpack.c.l.b16 %v1281
      %v1297 = vunpack.c.l.b16 %v1282
      %v1298 = vpack.c.b16 %v1295, %v1294
      %v1299 = vpack.c.b16 %v1297, %v1296
      %v1303 = vsel %vm673, %v1278, 0
      %1305 = vmatprep.subr.bf16.mxu0 0
      %1306 = vmatpush1.bf16.msra.mxu0 %v1298
      %1307 = vmatprep.subr.bf16.mxu0 0
      %1308 = vmatpush1.bf16.msra.mxu0 %v1299
      %1309 = vmatprep.subr.bf16.mxu0 0
      %1310 = vmatpush1.bf16.msra.mxu0 0
      %1311 = vmatprep.subr.bf16.mxu0 0
      %1312 = vmatpush1.bf16.msra.mxu0 0
      %1313 = vmatprep.subr.bf16.mxu0 0
      %1314 = vmatpush1.bf16.msra.mxu0 0
      %1315 = vmatprep.subr.bf16.mxu0 0
      %1316 = vmatpush1.bf16.msra.mxu0 0
      %1317 = vmatprep.subr.bf16.mxu0 0
      %1318 = vmatpush1.bf16.msra.mxu0 0
      %1319 = vmatprep.subr.bf16.mxu0 0
      %1320 = vmatpush1.bf16.msra.mxu0 0
      %1321 = vmatprep.subr.bf16.mxu0 0
      %1322 = vmatpush1.bf16.msra.mxu0 0
      %1323 = vmatprep.subr.bf16.mxu0 0
      %1324 = vmatpush1.bf16.msra.mxu0 0
      %1325 = vmatprep.subr.bf16.mxu0 0
      %1326 = vmatpush1.bf16.msra.mxu0 0
      %1327 = vmatprep.subr.bf16.mxu0 0
      %1328 = vmatpush1.bf16.msra.mxu0 0
      %1329 = vmatprep.subr.bf16.mxu0 0
      %1330 = vmatpush1.bf16.msra.mxu0 0
      %1331 = vmatprep.subr.bf16.mxu0 0
      %1332 = vmatpush1.bf16.msra.mxu0 0
      %1333 = vmatprep.subr.bf16.mxu0 0
      %1334 = vmatpush1.bf16.msra.mxu0 0
      %1335 = vmatprep.subr.bf16.mxu0 0
      %1336 = vmatpush1.bf16.msra.mxu0 0
      %1337 = vmatprep.mubr.bf16.mxu0 0
      %1338 = vmatmul.mubr.bf16.gmra.mrb[0].mxu0 %v1303
      %v1339 = vpop.f32.mrb[0].mxu0
      %v1340 = vadd.f32 %v1288, %v1339
      %v1341 = vpop.f32.mrb[0].mxu0
      %v1342 = vpop.f32.mrb[0].mxu0
      %v1343 = vpop.f32.mrb[0].mxu0
      %1344 = vdwg.mxu0
      %v1345 = vmax.f32 %v1340, 0.0
      %v1346 = vpack.c.bf16 %v1345, %v1345
      %v1347 = vld [vmem:[%s626] sm:$0xf]
      %v1348 = vld [vmem:[%s626 + $0x4] sm:$0xf]
      %v1349 = vld [vmem:[%s626 + $0x8] sm:$0xf]
      %v1350 = vld [vmem:[%s626 + $0xc] sm:$0xf]
      %v1351 = vld [vmem:[%s626 + $0x10] sm:$0xf]
      %v1352 = vld [vmem:[%s626 + $0x14] sm:$0xf]
      %v1353 = vld [vmem:[%s626 + $0x18] sm:$0xf]
      %v1354 = vld [vmem:[%s626 + $0x1c] sm:$0xf]
      %v1355 = vld [vmem:[%s629] sm:$0x1]
      %v1357 = vlaneseq
      %v1358 = vshrl.u32 %v1357, 7
      %v1359 = vsub.s32 0, %v1358
      %v1360 = vrot.slane %v1355, %v1359
      %v1370 = vunpack.c.l.b16 %v1347
      %v1371 = vunpack.c.l.b16 %v1348
      %v1372 = vunpack.c.l.b16 %v1349
      %v1373 = vunpack.c.l.b16 %v1350
      %v1374 = vunpack.c.l.b16 %v1351
      %v1375 = vunpack.c.l.b16 %v1352
      %v1376 = vunpack.c.l.b16 %v1353
      %v1377 = vunpack.c.l.b16 %v1354
      %v1378 = vpack.c.b16 %v1371, %v1370
      %v1379 = vpack.c.b16 %v1373, %v1372
      %v1380 = vpack.c.b16 %v1375, %v1374
      %v1381 = vpack.c.b16 %v1377, %v1376
      %vm1386 = vcmask 523264
      %v1388 = vsel %vm1386, %v1346, 0
      %1390 = vmatprep.subr.bf16.mxu0 0
      %1391 = vmatpush1.bf16.msra.mxu0 %v1378
      %1392 = vmatprep.subr.bf16.mxu0 0
      %1393 = vmatpush1.bf16.msra.mxu0 %v1379
      %1394 = vmatprep.subr.bf16.mxu0 0
      %1395 = vmatpush1.bf16.msra.mxu0 %v1380
      %1396 = vmatprep.subr.bf16.mxu0 0
      %1397 = vmatpush1.bf16.msra.mxu0 %v1381
      %1398 = vmatprep.subr.bf16.mxu0 0
      %1399 = vmatpush1.bf16.msra.mxu0 0
      %1400 = vmatprep.subr.bf16.mxu0 0
      %1401 = vmatpush1.bf16.msra.mxu0 0
      %1402 = vmatprep.subr.bf16.mxu0 0
      %1403 = vmatpush1.bf16.msra.mxu0 0
      %1404 = vmatprep.subr.bf16.mxu0 0
      %1405 = vmatpush1.bf16.msra.mxu0 0
      %1406 = vmatprep.subr.bf16.mxu0 0
      %1407 = vmatpush1.bf16.msra.mxu0 0
      %1408 = vmatprep.subr.bf16.mxu0 0
      %1409 = vmatpush1.bf16.msra.mxu0 0
      %1410 = vmatprep.subr.bf16.mxu0 0
      %1411 = vmatpush1.bf16.msra.mxu0 0
      %1412 = vmatprep.subr.bf16.mxu0 0
      %1413 = vmatpush1.bf16.msra.mxu0 0
      %1414 = vmatprep.subr.bf16.mxu0 0
      %1415 = vmatpush1.bf16.msra.mxu0 0
      %1416 = vmatprep.subr.bf16.mxu0 0
      %1417 = vmatpush1.bf16.msra.mxu0 0
      %1418 = vmatprep.subr.bf16.mxu0 0
      %1419 = vmatpush1.bf16.msra.mxu0 0
      %1420 = vmatprep.subr.bf16.mxu0 0
      %1421 = vmatpush1.bf16.msra.mxu0 0
      %1422 = vmatprep.mubr.bf16.mxu0 0
      %1423 = vmatmul.mubr.bf16.gmra.mrb[0].mxu0 %v1388
      %v1424 = vpop.f32.mrb[0].mxu0
      %v1425 = vadd.f32 %v1360, %v1424
      %v1426 = vpop.f32.mrb[0].mxu0
      %v1427 = vpop.f32.mrb[0].mxu0
      %v1428 = vpop.f32.mrb[0].mxu0
      %1429 = vdwg.mxu0
      %v1430 = vadd.f32 %v1277, %v1425
      %v1431 = vld [vmem:[%s632] sm:$0x1]
      %v1432 = vld [vmem:[%s635] sm:$0x1]
      %v1433 = vsel %vm673, %v1430, 0.0
      %1434 = vadd.xlane.f32.xlu0 %v1433
      %v1435 = vpop.xlane.xlu0 %1434
      %v1436 = vmul.f32 %v1435, %v1253
      %v1437 = vsub.f32 %v1430, %v1436
      %v1438 = vmul.f32 %v1437, %v1437
      %v1439 = vsel %vm673, %v1438, 0.0
      %1440 = vadd.xlane.f32.xlu0 %v1439
      %v1441 = vpop.xlane.xlu0 %1440
      %v1442 = vmul.f32 %v1441, %v1253
      %v1443 = vadd.f32 %v1442, 1e-05
      %v1444 = vrsqrt.pop %v1443
      %v1445 = vmul.f32 %v1437, %v1444
      %v1447 = vlaneseq
      %v1448 = vshrl.u32 %v1447, 7
      %v1449 = vsub.s32 0, %v1448
      %v1450 = vrot.slane %v1431, %v1449
      %v1452 = vmul.f32 %v1445, %v1450
      %v1454 = vlaneseq
      %v1455 = vshrl.u32 %v1454, 7
      %v1456 = vsub.s32 0, %v1455
      %v1457 = vrot.slane %v1432, %v1456
      %v1459 = vadd.f32 %v1452, %v1457
      %1460 = vst.msk [vmem:[%s639] sm:$0xff] %vm673, %v1459
      %p1461 = scmp.lt.s32.totalorder %s28, 1
      %s1462 = scalar_select %p1461, %s28, 1
      %s1463 = smul.addr %s1462, 8
      %s1464 = scalar_lea.vmem %s13, %s1463
      // Predicated region
      $region77: #{_lambda_.2} parent=71 // pred_check
        %p1465 = pneg %p392
      $region78: #{_lambda_.2} parent=71 // pred_check_branch
        %1467 = sbr.rel (%p1465) target = $region80
      $region79: #{_lambda_.2} parent=71 // pred_region
        _
      $region80: #{_lambda_.2} parent=71 // pred_fallthru
        _
    $region72: #{_lambda_.2} parent=5 // pred_fallthru
      _
    %p1468 = scmp.le.s32.totalorder 2, %s19
    // Predicated region
    $region81: #{_lambda_.2} parent=5 // pred_check
      %p1469 = pneg %p1468
    $region82: #{_lambda_.2} parent=5 // pred_check_branch
      %1471 = sbr.rel (%p1469) target = $region84
    $region83: #{_lambda_.2} parent=5 // pred_region
      %s1472 = ssub.s32 %s19, 2
      // Predicated region
      $region85: #{_lambda_.2} parent=83 // pred_check
        %p1473 = pneg %p398
      $region86: #{_lambda_.2} parent=83 // pred_check_branch
        %1475 = sbr.rel (%p1473) target = $region88
      $region87: #{_lambda_.2} parent=83 // pred_region
        %p1476 = scmp.lt.s32.totalorder %s30, 1
        %s1477 = scalar_select %p1476, %s30, 1
        %s1478 = smul.addr %s1477, 8
        %s1479 = scalar_lea.vmem %s13, %s1478
      $region88: #{_lambda_.2} parent=83 // pred_fallthru
        _
    $region84: #{_lambda_.2} parent=5 // pred_fallthru
      _
  $region6: #{_lambda_.2} parent=0 // loop_footer
    %s23 = sadd.s32 1, %s19
  $region7: #{_lambda_.2} parent=0 // loop_footer_branch
    %18 = sbr.rel target = $region3
  $region8: #{_lambda_.2} parent=0 // loop_exit
    _

</llo_original>
